<compile_context>
chip_gen: v5e
topology: v5e:2x2
jax: 0.10.0
libtpu: 0.0.40
codegen_flags: <defaults>
</compile_context>

<pallas_src>
import jax
import jax.numpy as jnp
from jax.experimental import pallas as pl
from jax.experimental.pallas import tpu as pltpu

HIDDEN = 512
OUT = 784            # 28 * 28


def decoder_kernel(z_ref, w1_ref, b1_ref, w2_ref, b2_ref, out_ref):
    # z: (TILE_B, L) float32 latent block.
    z = z_ref[...]

    # linear1 + relu -> (TILE_B, 512).  bf16 MXU inputs, f32 accumulation.
    h = jnp.dot(z.astype(jnp.bfloat16), w1_ref[...],
                preferred_element_type=jnp.float32) + b1_ref[...]
    h = jnp.maximum(h, 0.0)

    # linear2 -> (TILE_B, 784).
    y = jnp.dot(h.astype(jnp.bfloat16), w2_ref[...],
                preferred_element_type=jnp.float32) + b2_ref[...]

    # sigmoid(y) = 1 / (1 + exp(-y)): exp on the EUP, approx reciprocal also on
    # the EUP -> no f32 VALU divide competing with the store slot.
    e = jnp.exp(-y)
    out_ref[...] = pl.reciprocal(1.0 + e, approx=True).astype(out_ref.dtype)


def _pick_tile_b(B):
    """Largest batch tile (<= 2048) dividing B; >= 2 grid steps for B >= 256."""
    # Cap at B//2 for moderate/large batches so the parallel grid axis has at
    # least two steps (v7x has two TensorCores; no effect on v5e/v6e).
    limit = B // 2 if (B >= 256 and B % 16 == 0) else B
    for cand in (2048, 1024, 512, 256, 128, 64, 32, 16, 8):
        if cand <= limit and B % cand == 0:
            return cand
    return B  # odd B: single block equal to the full dim (always legal)


def decoder_forward(z, params):
    """z: (B, latent_dims) float32.  Returns (B, 1, 28, 28) float32."""
    w1, b1, w2, b2 = params
    B, L = z.shape
    assert w1.shape == (L, HIDDEN) and w2.shape == (HIDDEN, OUT)

    tile_b = _pick_tile_b(B)
    grid = (B // tile_b,)

    cost = pl.CostEstimate(
        flops=2 * B * (L * HIDDEN + HIDDEN * OUT),
        transcendentals=B * OUT,
        bytes_accessed=(z.size * 4
                        + w1.size * 2 + b1.size * 4
                        + w2.size * 2 + b2.size * 4
                        + B * OUT * 4),
    )

    out = pl.pallas_call(
        decoder_kernel,
        out_shape=jax.ShapeDtypeStruct((B, OUT), jnp.float32),
        grid=grid,
        in_specs=[
            pl.BlockSpec((tile_b, L), lambda i: (i, 0)),      # z tile
            pl.BlockSpec((L, HIDDEN), lambda i: (0, 0)),      # W1 (resident)
            pl.BlockSpec((1, HIDDEN), lambda i: (0, 0)),      # b1
            pl.BlockSpec((HIDDEN, OUT), lambda i: (0, 0)),    # W2 (resident)
            pl.BlockSpec((1, OUT), lambda i: (0, 0)),         # b2
        ],
        out_specs=pl.BlockSpec((tile_b, OUT), lambda i: (i, 0)),
        compiler_params=pltpu.CompilerParams(
            dimension_semantics=("parallel",),
            vmem_limit_bytes=32 * 1024 * 1024),
        cost_estimate=cost,
    )(z, w1, b1, w2, b2)

    # Free reshape, same as the PyTorch module.
    return out.reshape(B, 1, 28, 28)


def init_params(key, latent_dims):
    """Deterministic synthetic parameters (shapes from the PyTorch __init__)."""
    k1, k2, k3, k4 = jax.random.split(key, 4)
    # Stored as (in, out); weights in bf16 (MXU input dtype), biases f32, (1, out).
    w1 = (jax.random.normal(k1, (latent_dims, HIDDEN), jnp.float32) * 0.05
          ).astype(jnp.bfloat16)
    b1 = jax.random.normal(k2, (1, HIDDEN), jnp.float32) * 0.01
    w2 = (jax.random.normal(k3, (HIDDEN, OUT), jnp.float32) * 0.02
          ).astype(jnp.bfloat16)
    b2 = jax.random.normal(k4, (1, OUT), jnp.float32) * 0.01
    return (w1, b1, w2, b2)


if __name__ == "__main__":
    latent_dims = 16
    B = 8

    key = jax.random.PRNGKey(0)
    k_z, k_p = jax.random.split(key, 2)

    z = jax.random.normal(k_z, (B, latent_dims), jnp.float32)
    params = init_params(k_p, latent_dims)

    out = decoder_forward(z, params)
    jax.block_until_ready(out)
    assert out.shape == (B, 1, 28, 28)

    # Pure-JAX reference of the same math (bf16-quantized weights AND the same
    # bf16 quantization of the post-ReLU activation, f32 accumulation).
    w1, b1, w2, b2 = params
    h_ref = jnp.maximum(z @ w1.astype(jnp.float32) + b1, 0.0)
    h_ref_q = h_ref.astype(jnp.bfloat16).astype(jnp.float32)
    y_ref = h_ref_q @ w2.astype(jnp.float32) + b2
    ref = (1.0 / (1.0 + jnp.exp(-y_ref))).reshape(B, 1, 28, 28)
    assert jnp.allclose(out, ref, atol=2e-3, rtol=1e-2), float(
        jnp.max(jnp.abs(out - ref)))

    print("KERNEL_OK")
</pallas_src>

<mosaic_0001>
module attributes {stable_mosaic.version = 11 : i64} {
  func.func @decoder_kernel(%arg0: i32, %arg1: memref<8x16xf32, #tpu.memory_space<vmem>>, %arg2: memref<16x512xbf16, #tpu.memory_space<vmem>>, %arg3: memref<1x512xf32, #tpu.memory_space<vmem>>, %arg4: memref<512x784xbf16, #tpu.memory_space<vmem>>, %arg5: memref<1x784xf32, #tpu.memory_space<vmem>>, %arg6: memref<8x784xf32, #tpu.memory_space<vmem>>) attributes {dimension_semantics = [#tpu.dimension_semantics<parallel>], iteration_bounds = array<i64: 1>, scalar_prefetch = 0 : i64, scratch_operands = 0 : i64, tpu.core_type = #tpu.core_type<tc>, window_params = [{transform_indices = @transform_0, window_bounds = array<i64: 8, 16>}, {pipeline_mode = #tpu.pipeline_mode<synchronous>, transform_indices = @transform_1, window_bounds = array<i64: 16, 512>}, {pipeline_mode = #tpu.pipeline_mode<synchronous>, transform_indices = @transform_2, window_bounds = array<i64: 1, 512>}, {pipeline_mode = #tpu.pipeline_mode<synchronous>, transform_indices = @transform_3, window_bounds = array<i64: 512, 784>}, {pipeline_mode = #tpu.pipeline_mode<synchronous>, transform_indices = @transform_4, window_bounds = array<i64: 1, 784>}, {transform_indices = @transform_5, window_bounds = array<i64: 8, 784>}]} {
    %c0 = arith.constant 0 : index
    %c0_0 = arith.constant 0 : index
    %0 = vector.load %arg1[%c0, %c0_0] : memref<8x16xf32, #tpu.memory_space<vmem>>, vector<8x16xf32>
    %1 = arith.truncf %0 : vector<8x16xf32> to vector<8x16xbf16>
    %c0_1 = arith.constant 0 : index
    %c0_2 = arith.constant 0 : index
    %2 = vector.load %arg2[%c0_1, %c0_2] : memref<16x512xbf16, #tpu.memory_space<vmem>>, vector<16x512xbf16>
    %cst = arith.constant dense<0.000000e+00> : vector<8x512xf32>
    %3 = tpu.matmul %1, %2, %cst {dimension_numbers = #tpu.dot_dimension_numbers<[1], [0], [0], [1], [0, 0, 1, 1], [], []>} : vector<8x16xbf16>, vector<16x512xbf16>, vector<8x512xf32> -> vector<8x512xf32>
    %c0_3 = arith.constant 0 : index
    %c0_4 = arith.constant 0 : index
    %4 = vector.load %arg3[%c0_3, %c0_4] : memref<1x512xf32, #tpu.memory_space<vmem>>, vector<1x512xf32>
    %5 = vector.broadcast %4 : vector<1x512xf32> to vector<8x512xf32>
    %6 = arith.addf %3, %5 : vector<8x512xf32>
    %cst_5 = arith.constant 0.000000e+00 : f32
    %7 = vector.broadcast %cst_5 : f32 to vector<8x512xf32>
    %8 = arith.maximumf %6, %7 : vector<8x512xf32>
    %9 = arith.truncf %8 : vector<8x512xf32> to vector<8x512xbf16>
    %c0_6 = arith.constant 0 : index
    %c0_7 = arith.constant 0 : index
    %10 = vector.load %arg4[%c0_6, %c0_7] : memref<512x784xbf16, #tpu.memory_space<vmem>>, vector<512x784xbf16>
    %cst_8 = arith.constant dense<0.000000e+00> : vector<8x784xf32>
    %11 = tpu.matmul %9, %10, %cst_8 {dimension_numbers = #tpu.dot_dimension_numbers<[1], [0], [0], [1], [0, 0, 1, 1], [], []>} : vector<8x512xbf16>, vector<512x784xbf16>, vector<8x784xf32> -> vector<8x784xf32>
    %c0_9 = arith.constant 0 : index
    %c0_10 = arith.constant 0 : index
    %12 = vector.load %arg5[%c0_9, %c0_10] : memref<1x784xf32, #tpu.memory_space<vmem>>, vector<1x784xf32>
    %13 = vector.broadcast %12 : vector<1x784xf32> to vector<8x784xf32>
    %14 = arith.addf %11, %13 : vector<8x784xf32>
    %cst_11 = arith.constant 0.000000e+00 : f32
    %15 = vector.broadcast %cst_11 : f32 to vector<8x784xf32>
    %16 = arith.subf %15, %14 : vector<8x784xf32>
    %17 = math.exp %16 : vector<8x784xf32>
    %cst_12 = arith.constant 1.000000e+00 : f32
    %18 = vector.broadcast %cst_12 : f32 to vector<8x784xf32>
    %19 = arith.addf %18, %17 : vector<8x784xf32>
    %20 = tpu.reciprocal %19 {approx = true} : vector<8x784xf32> -> vector<8x784xf32>
    %c0_13 = arith.constant 0 : index
    %c0_14 = arith.constant 0 : index
    %21 = vector.load %arg6[%c0_13, %c0_14] : memref<8x784xf32, #tpu.memory_space<vmem>>, vector<8x784xf32>
    tpu.vector_store %arg6[%c0_13, %c0_14], %20 {strides = array<i32>} : memref<8x784xf32, #tpu.memory_space<vmem>>, vector<8x784xf32>,
    return
  }
  func.func @transform_0(%arg0: i32) -> (i32, i32) {
    %c0_i32 = arith.constant 0 : i32
    %c0_i32_0 = arith.constant 0 : i32
    return %arg0, %c0_i32 : i32, i32
  }
  func.func @transform_1(%arg0: i32) -> (i32, i32) {
    %c0_i32 = arith.constant 0 : i32
    %c0_i32_0 = arith.constant 0 : i32
    %c0_i32_1 = arith.constant 0 : i32
    return %c0_i32, %c0_i32_0 : i32, i32
  }
  func.func @transform_2(%arg0: i32) -> (i32, i32) {
    %c0_i32 = arith.constant 0 : i32
    %c0_i32_0 = arith.constant 0 : i32
    %c0_i32_1 = arith.constant 0 : i32
    return %c0_i32, %c0_i32_0 : i32, i32
  }
  func.func @transform_3(%arg0: i32) -> (i32, i32) {
    %c0_i32 = arith.constant 0 : i32
    %c0_i32_0 = arith.constant 0 : i32
    %c0_i32_1 = arith.constant 0 : i32
    return %c0_i32, %c0_i32_0 : i32, i32
  }
  func.func @transform_4(%arg0: i32) -> (i32, i32) {
    %c0_i32 = arith.constant 0 : i32
    %c0_i32_0 = arith.constant 0 : i32
    %c0_i32_1 = arith.constant 0 : i32
    return %c0_i32, %c0_i32_0 : i32, i32
  }
  func.func @transform_5(%arg0: i32) -> (i32, i32) {
    %c0_i32 = arith.constant 0 : i32
    %c0_i32_0 = arith.constant 0 : i32
    return %arg0, %c0_i32 : i32, i32
  }
}

</mosaic_0001>

<llo_original>
// kernel: tpu_custom_call.1
$region0: #{tpu_custom_call.1}
  #allocation0 [shape = 'u32[]', space=smem, size = 0x4, offset = 0x4, fixed_abs, tag = 'smem constant byte address 0x4 - core index']
  #allocation1 [shape = 'u32[72,128]{1,0:T(1,128)}', space=vmem, size = 0x9000, scoped, tag = 'internal scratch']
  %s0 = inlined_call_operand.vmem [shape: f32[8,16], index: 0, kind: input, shape index: {}]
  %s1 = inlined_call_operand.vmem [shape: bf16[16,512], index: 1, kind: input, shape index: {}]
  %s2 = inlined_call_operand.vmem [shape: f32[1,512], index: 2, kind: input, shape index: {}]
  %s3 = inlined_call_operand.vmem [shape: bf16[512,784], index: 3, kind: input, shape index: {}]
  %s4 = inlined_call_operand.vmem [shape: f32[1,784], index: 4, kind: input, shape index: {}]
  %s5 = inlined_call_operand.hbm [shape: f32[8,784], index: 5, kind: output, shape index: {}]
  %s6 = sld [smem:[#allocation0]]
  $region30: #{tpu_custom_call.1} parent=0
    _
  %s8 = ssub.s32 1, %s6
  %s9 = scalar_select 0, %s8, %s6
  $region1: #{tpu_custom_call.1} parent=0
    #allocation2 [shape = 'u8[28672]{0}', space=vmem, size = 0x7000, scoped, tag = 'output window, operand 0, single buffered']
    #allocation3 [shape = 's32[1]{0}', space=sflag, size = 0x4, scoped, tag = 'scoped memory for tpu_custom_call.1']
    %10 = vsyncpa [#allocation3], 0
    // Predicated region
    $region2: #{tpu_custom_call.1} parent=1 // pred_check
      _
    $region3: #{tpu_custom_call.1} parent=1 // pred_check_branch
      %12 = sbr.rel (0) target = $region5
    $region4: #{tpu_custom_call.1} parent=1 // pred_region
      _
    $region5: #{tpu_custom_call.1} parent=1 // pred_fallthru
      _
    // Predicated region
    $region6: #{tpu_custom_call.1} parent=1 // pred_check
      _
    $region7: #{tpu_custom_call.1} parent=1 // pred_check_branch
      %14 = sbr.rel (0) target = $region9
    $region8: #{tpu_custom_call.1} parent=1 // pred_region
      _
    $region9: #{tpu_custom_call.1} parent=1 // pred_fallthru
      _
    // Predicated region
    $region10: #{tpu_custom_call.1} parent=1 // pred_check
      _
    $region11: #{tpu_custom_call.1} parent=1 // pred_check_branch
      %16 = sbr.rel (0) target = $region13
    $region12: #{tpu_custom_call.1} parent=1 // pred_region
      _
    $region13: #{tpu_custom_call.1} parent=1 // pred_fallthru
      _
    // Predicated region
    $region14: #{tpu_custom_call.1} parent=1 // pred_check
      _
    $region15: #{tpu_custom_call.1} parent=1 // pred_check_branch
      %18 = sbr.rel (0) target = $region17
    $region16: #{tpu_custom_call.1} parent=1 // pred_region
      _
    $region17: #{tpu_custom_call.1} parent=1 // pred_fallthru
      _
    // Predicated region
    $region18: #{tpu_custom_call.1} parent=1 // pred_check
      _
    $region19: #{tpu_custom_call.1} parent=1 // pred_check_branch
      %20 = sbr.rel (0) target = $region21
    $region20: #{tpu_custom_call.1} parent=1 // pred_region
      _
    $region21: #{tpu_custom_call.1} parent=1 // pred_fallthru
      _
    %v22 = vld [vmem:[%s0] sm:$0xff]
    %v23 = vpack.c.bf16 %v22, %v22
    %v24 = vld [vmem:[%s1] sm:$0xff]
    %v25 = vld [vmem:[%s1 + $0x8] sm:$0xff]
    %v26 = vld [vmem:[%s1 + $0x10] sm:$0xff]
    %v27 = vld [vmem:[%s1 + $0x18] sm:$0xff]
    %v28 = vld [vmem:[%s2] sm:$0xf]
    %v30 = vperm.slane %v28, 0
    %v31 = vperm.slane %v28, 1
    %v32 = vperm.slane %v28, 2
    %v33 = vperm.slane %v28, 3
    %v42 = vunpack.c.l.b16 %v24
    %v43 = vunpack.c.h.b16 %v24
    %v44 = vunpack.c.l.b16 %v25
    %v45 = vunpack.c.h.b16 %v25
    %v46 = vunpack.c.l.b16 %v26
    %v47 = vunpack.c.h.b16 %v26
    %v48 = vunpack.c.l.b16 %v27
    %v49 = vunpack.c.h.b16 %v27
    %v50 = vpack.c.b16 %v46, %v42
    %v51 = vpack.c.b16 %v47, %v43
    %v52 = vpack.c.b16 %v48, %v44
    %v53 = vpack.c.b16 %v49, %v45
    %vm58 = vcmask 130048
    %v60 = vsel %vm58, %v23, 0
    %62 = vmatpush.bf16.msra.mxu0 0
    %63 = vmatpush.bf16.msra.mxu0 0
    %64 = vmatpush.bf16.msra.mxu0 0
    %65 = vmatpush.bf16.msra.mxu0 0
    %66 = vmatpush.bf16.msra.mxu0 0
    %67 = vmatpush.bf16.msra.mxu0 0
    %68 = vmatpush.bf16.msra.mxu0 0
    %69 = vmatpush.bf16.msra.mxu0 %v50
    %70 = vmatmul.bf16.gmra.mxu0 %v60
    %v71 = vpop.f32.mrf.mxu0
    %v72 = vadd.f32 %v30, %v71
    %v73 = vpop.f32.mrf.mxu0
    %74 = vdwg.mxu0
    %75 = vmatpush.bf16.msra.mxu0 0
    %76 = vmatpush.bf16.msra.mxu0 0
    %77 = vmatpush.bf16.msra.mxu0 0
    %78 = vmatpush.bf16.msra.mxu0 0
    %79 = vmatpush.bf16.msra.mxu0 0
    %80 = vmatpush.bf16.msra.mxu0 0
    %81 = vmatpush.bf16.msra.mxu0 0
    %82 = vmatpush.bf16.msra.mxu0 %v51
    %83 = vmatmul.bf16.gmra.mxu0 %v60
    %v84 = vpop.f32.mrf.mxu0
    %v85 = vadd.f32 %v31, %v84
    %v86 = vpop.f32.mrf.mxu0
    %87 = vdwg.mxu0
    %88 = vmatpush.bf16.msra.mxu0 0
    %89 = vmatpush.bf16.msra.mxu0 0
    %90 = vmatpush.bf16.msra.mxu0 0
    %91 = vmatpush.bf16.msra.mxu0 0
    %92 = vmatpush.bf16.msra.mxu0 0
    %93 = vmatpush.bf16.msra.mxu0 0
    %94 = vmatpush.bf16.msra.mxu0 0
    %95 = vmatpush.bf16.msra.mxu0 %v52
    %96 = vmatmul.bf16.gmra.mxu0 %v60
    %v97 = vpop.f32.mrf.mxu0
    %v98 = vadd.f32 %v32, %v97
    %v99 = vpop.f32.mrf.mxu0
    %100 = vdwg.mxu0
    %101 = vmatpush.bf16.msra.mxu0 0
    %102 = vmatpush.bf16.msra.mxu0 0
    %103 = vmatpush.bf16.msra.mxu0 0
    %104 = vmatpush.bf16.msra.mxu0 0
    %105 = vmatpush.bf16.msra.mxu0 0
    %106 = vmatpush.bf16.msra.mxu0 0
    %107 = vmatpush.bf16.msra.mxu0 0
    %108 = vmatpush.bf16.msra.mxu0 %v53
    %109 = vmatmul.bf16.gmra.mxu0 %v60
    %v110 = vpop.f32.mrf.mxu0
    %v111 = vadd.f32 %v33, %v110
    %v112 = vpop.f32.mrf.mxu0
    %113 = vdwg.mxu0
    %v114 = vmax.f32 %v72, 0.0
    %v115 = vmax.f32 %v85, 0.0
    %v116 = vmax.f32 %v98, 0.0
    %v117 = vmax.f32 %v111, 0.0
    %v118 = vpack.c.bf16 %v114, %v114
    %v119 = vpack.c.bf16 %v115, %v115
    %v120 = vpack.c.bf16 %v116, %v116
    %v121 = vpack.c.bf16 %v117, %v117
    %v122 = vld [vmem:[%s3] sm:$0xff]
    %v123 = vld [vmem:[%s3 + $0x8] sm:$0xff]
    %v124 = vld [vmem:[%s3 + $0x10] sm:$0xff]
    %v125 = vld [vmem:[%s3 + $0x18] sm:$0xf]
    %v126 = vld [vmem:[%s3 + $0x1c] sm:$0xff]
    %v127 = vld [vmem:[%s3 + $0x24] sm:$0xff]
    %v128 = vld [vmem:[%s3 + $0x2c] sm:$0xff]
    %v129 = vld [vmem:[%s3 + $0x34] sm:$0xf]
    %v130 = vld [vmem:[%s3 + $0x38] sm:$0xff]
    %v131 = vld [vmem:[%s3 + $0x40] sm:$0xff]
    %v132 = vld [vmem:[%s3 + $0x48] sm:$0xff]
    %v133 = vld [vmem:[%s3 + $0x50] sm:$0xf]
    %v134 = vld [vmem:[%s3 + $0x54] sm:$0xff]
    %v135 = vld [vmem:[%s3 + $0x5c] sm:$0xff]
    %v136 = vld [vmem:[%s3 + $0x64] sm:$0xff]
    %v137 = vld [vmem:[%s3 + $0x6c] sm:$0xf]
    %v138 = vld [vmem:[%s3 + $0x70] sm:$0xff]
    %v139 = vld [vmem:[%s3 + $0x78] sm:$0xff]
    %v140 = vld [vmem:[%s3 + $0x80] sm:$0xff]
    %v141 = vld [vmem:[%s3 + $0x88] sm:$0xf]
    %v142 = vld [vmem:[%s3 + $0x8c] sm:$0xff]
    %v143 = vld [vmem:[%s3 + $0x94] sm:$0xff]
    %v144 = vld [vmem:[%s3 + $0x9c] sm:$0xff]
    %v145 = vld [vmem:[%s3 + $0xa4] sm:$0xf]
    %v146 = vld [vmem:[%s3 + $0xa8] sm:$0xff]
    %v147 = vld [vmem:[%s3 + $0xb0] sm:$0xff]
    %v148 = vld [vmem:[%s3 + $0xb8] sm:$0xff]
    %v149 = vld [vmem:[%s3 + $0xc0] sm:$0xf]
    %v150 = vld [vmem:[%s3 + $0xc4] sm:$0xff]
    %v151 = vld [vmem:[%s3 + $0xcc] sm:$0xff]
    %v152 = vld [vmem:[%s3 + $0xd4] sm:$0xff]
    %v153 = vld [vmem:[%s3 + $0xdc] sm:$0xf]
    %v154 = vld [vmem:[%s3 + $0xe0] sm:$0xff]
    %v155 = vld [vmem:[%s3 + $0xe8] sm:$0xff]
    %v156 = vld [vmem:[%s3 + $0xf0] sm:$0xff]
    %v157 = vld [vmem:[%s3 + $0xf8] sm:$0xf]
    %v158 = vld [vmem:[%s3 + $0xfc] sm:$0xff]
    %v159 = vld [vmem:[%s3 + $0x104] sm:$0xff]
    %v160 = vld [vmem:[%s3 + $0x10c] sm:$0xff]
    %v161 = vld [vmem:[%s3 + $0x114] sm:$0xf]
    %v162 = vld [vmem:[%s3 + $0x118] sm:$0xff]
    %v163 = vld [vmem:[%s3 + $0x120] sm:$0xff]
    %v164 = vld [vmem:[%s3 + $0x128] sm:$0xff]
    %v165 = vld [vmem:[%s3 + $0x130] sm:$0xf]
    %v166 = vld [vmem:[%s3 + $0x134] sm:$0xff]
    %v167 = vld [vmem:[%s3 + $0x13c] sm:$0xff]
    %v168 = vld [vmem:[%s3 + $0x144] sm:$0xff]
    %v169 = vld [vmem:[%s3 + $0x14c] sm:$0xf]
    %v170 = vld [vmem:[%s3 + $0x150] sm:$0xff]
    %v171 = vld [vmem:[%s3 + $0x158] sm:$0xff]
    %v172 = vld [vmem:[%s3 + $0x160] sm:$0xff]
    %v173 = vld [vmem:[%s3 + $0x168] sm:$0xf]
    %v174 = vld [vmem:[%s3 + $0x16c] sm:$0xff]
    %v175 = vld [vmem:[%s3 + $0x174] sm:$0xff]
    %v176 = vld [vmem:[%s3 + $0x17c] sm:$0xff]
    %v177 = vld [vmem:[%s3 + $0x184] sm:$0xf]
    %v178 = vld [vmem:[%s3 + $0x188] sm:$0xff]
    %v179 = vld [vmem:[%s3 + $0x190] sm:$0xff]
    %v180 = vld [vmem:[%s3 + $0x198] sm:$0xff]
    %v181 = vld [vmem:[%s3 + $0x1a0] sm:$0xf]
    %v182 = vld [vmem:[%s3 + $0x1a4] sm:$0xff]
    %v183 = vld [vmem:[%s3 + $0x1ac] sm:$0xff]
    %v184 = vld [vmem:[%s3 + $0x1b4] sm:$0xff]
    %v185 = vld [vmem:[%s3 + $0x1bc] sm:$0xf]
    %v186 = vld [vmem:[%s3 + $0x1c0] sm:$0xff]
    %v187 = vld [vmem:[%s3 + $0x1c8] sm:$0xff]
    %v188 = vld [vmem:[%s3 + $0x1d0] sm:$0xff]
    %v189 = vld [vmem:[%s3 + $0x1d8] sm:$0xf]
    %v190 = vld [vmem:[%s3 + $0x1dc] sm:$0xff]
    %v191 = vld [vmem:[%s3 + $0x1e4] sm:$0xff]
    %v192 = vld [vmem:[%s3 + $0x1ec] sm:$0xff]
    %v193 = vld [vmem:[%s3 + $0x1f4] sm:$0xf]
    %v194 = vld [vmem:[%s3 + $0x1f8] sm:$0xff]
    %v195 = vld [vmem:[%s3 + $0x200] sm:$0xff]
    %v196 = vld [vmem:[%s3 + $0x208] sm:$0xff]
    %v197 = vld [vmem:[%s3 + $0x210] sm:$0xf]
    %v198 = vld [vmem:[%s3 + $0x214] sm:$0xff]
    %v199 = vld [vmem:[%s3 + $0x21c] sm:$0xff]
    %v200 = vld [vmem:[%s3 + $0x224] sm:$0xff]
    %v201 = vld [vmem:[%s3 + $0x22c] sm:$0xf]
    %v202 = vld [vmem:[%s3 + $0x230] sm:$0xff]
    %v203 = vld [vmem:[%s3 + $0x238] sm:$0xff]
    %v204 = vld [vmem:[%s3 + $0x240] sm:$0xff]
    %v205 = vld [vmem:[%s3 + $0x248] sm:$0xf]
    %v206 = vld [vmem:[%s3 + $0x24c] sm:$0xff]
    %v207 = vld [vmem:[%s3 + $0x254] sm:$0xff]
    %v208 = vld [vmem:[%s3 + $0x25c] sm:$0xff]
    %v209 = vld [vmem:[%s3 + $0x264] sm:$0xf]
    %v210 = vld [vmem:[%s3 + $0x268] sm:$0xff]
    %v211 = vld [vmem:[%s3 + $0x270] sm:$0xff]
    %v212 = vld [vmem:[%s3 + $0x278] sm:$0xff]
    %v213 = vld [vmem:[%s3 + $0x280] sm:$0xf]
    %v214 = vld [vmem:[%s3 + $0x284] sm:$0xff]
    %v215 = vld [vmem:[%s3 + $0x28c] sm:$0xff]
    %v216 = vld [vmem:[%s3 + $0x294] sm:$0xff]
    %v217 = vld [vmem:[%s3 + $0x29c] sm:$0xf]
    %v218 = vld [vmem:[%s3 + $0x2a0] sm:$0xff]
    %v219 = vld [vmem:[%s3 + $0x2a8] sm:$0xff]
    %v220 = vld [vmem:[%s3 + $0x2b0] sm:$0xff]
    %v221 = vld [vmem:[%s3 + $0x2b8] sm:$0xf]
    %v222 = vld [vmem:[%s3 + $0x2bc] sm:$0xff]
    %v223 = vld [vmem:[%s3 + $0x2c4] sm:$0xff]
    %v224 = vld [vmem:[%s3 + $0x2cc] sm:$0xff]
    %v225 = vld [vmem:[%s3 + $0x2d4] sm:$0xf]
    %v226 = vld [vmem:[%s3 + $0x2d8] sm:$0xff]
    %v227 = vld [vmem:[%s3 + $0x2e0] sm:$0xff]
    %v228 = vld [vmem:[%s3 + $0x2e8] sm:$0xff]
    %v229 = vld [vmem:[%s3 + $0x2f0] sm:$0xf]
    %v230 = vld [vmem:[%s3 + $0x2f4] sm:$0xff]
    %v231 = vld [vmem:[%s3 + $0x2fc] sm:$0xff]
    %v232 = vld [vmem:[%s3 + $0x304] sm:$0xff]
    %v233 = vld [vmem:[%s3 + $0x30c] sm:$0xf]
    %v234 = vld [vmem:[%s3 + $0x310] sm:$0xff]
    %v235 = vld [vmem:[%s3 + $0x318] sm:$0xff]
    %v236 = vld [vmem:[%s3 + $0x320] sm:$0xff]
    %v237 = vld [vmem:[%s3 + $0x328] sm:$0xf]
    %v238 = vld [vmem:[%s3 + $0x32c] sm:$0xff]
    %v239 = vld [vmem:[%s3 + $0x334] sm:$0xff]
    %v240 = vld [vmem:[%s3 + $0x33c] sm:$0xff]
    %v241 = vld [vmem:[%s3 + $0x344] sm:$0xf]
    %v242 = vld [vmem:[%s3 + $0x348] sm:$0xff]
    %v243 = vld [vmem:[%s3 + $0x350] sm:$0xff]
    %v244 = vld [vmem:[%s3 + $0x358] sm:$0xff]
    %v245 = vld [vmem:[%s3 + $0x360] sm:$0xf]
    %v246 = vld [vmem:[%s3 + $0x364] sm:$0xff]
    %v247 = vld [vmem:[%s3 + $0x36c] sm:$0xff]
    %v248 = vld [vmem:[%s3 + $0x374] sm:$0xff]
    %v249 = vld [vmem:[%s3 + $0x37c] sm:$0xf]
    %v250 = vld [vmem:[%s3 + $0x380] sm:$0xff]
    %v251 = vld [vmem:[%s3 + $0x388] sm:$0xff]
    %v252 = vld [vmem:[%s3 + $0x390] sm:$0xff]
    %v253 = vld [vmem:[%s3 + $0x398] sm:$0xf]
    %v254 = vld [vmem:[%s3 + $0x39c] sm:$0xff]
    %v255 = vld [vmem:[%s3 + $0x3a4] sm:$0xff]
    %v256 = vld [vmem:[%s3 + $0x3ac] sm:$0xff]
    %v257 = vld [vmem:[%s3 + $0x3b4] sm:$0xf]
    %v258 = vld [vmem:[%s3 + $0x3b8] sm:$0xff]
    %v259 = vld [vmem:[%s3 + $0x3c0] sm:$0xff]
    %v260 = vld [vmem:[%s3 + $0x3c8] sm:$0xff]
    %v261 = vld [vmem:[%s3 + $0x3d0] sm:$0xf]
    %v262 = vld [vmem:[%s3 + $0x3d4] sm:$0xff]
    %v263 = vld [vmem:[%s3 + $0x3dc] sm:$0xff]
    %v264 = vld [vmem:[%s3 + $0x3e4] sm:$0xff]
    %v265 = vld [vmem:[%s3 + $0x3ec] sm:$0xf]
    %v266 = vld [vmem:[%s3 + $0x3f0] sm:$0xff]
    %v267 = vld [vmem:[%s3 + $0x3f8] sm:$0xff]
    %v268 = vld [vmem:[%s3 + $0x400] sm:$0xff]
    %v269 = vld [vmem:[%s3 + $0x408] sm:$0xf]
    %v270 = vld [vmem:[%s3 + $0x40c] sm:$0xff]
    %v271 = vld [vmem:[%s3 + $0x414] sm:$0xff]
    %v272 = vld [vmem:[%s3 + $0x41c] sm:$0xff]
    %v273 = vld [vmem:[%s3 + $0x424] sm:$0xf]
    %v274 = vld [vmem:[%s3 + $0x428] sm:$0xff]
    %v275 = vld [vmem:[%s3 + $0x430] sm:$0xff]
    %v276 = vld [vmem:[%s3 + $0x438] sm:$0xff]
    %v277 = vld [vmem:[%s3 + $0x440] sm:$0xf]
    %v278 = vld [vmem:[%s3 + $0x444] sm:$0xff]
    %v279 = vld [vmem:[%s3 + $0x44c] sm:$0xff]
    %v280 = vld [vmem:[%s3 + $0x454] sm:$0xff]
    %v281 = vld [vmem:[%s3 + $0x45c] sm:$0xf]
    %v282 = vld [vmem:[%s3 + $0x460] sm:$0xff]
    %v283 = vld [vmem:[%s3 + $0x468] sm:$0xff]
    %v284 = vld [vmem:[%s3 + $0x470] sm:$0xff]
    %v285 = vld [vmem:[%s3 + $0x478] sm:$0xf]
    %v286 = vld [vmem:[%s3 + $0x47c] sm:$0xff]
    %v287 = vld [vmem:[%s3 + $0x484] sm:$0xff]
    %v288 = vld [vmem:[%s3 + $0x48c] sm:$0xff]
    %v289 = vld [vmem:[%s3 + $0x494] sm:$0xf]
    %v290 = vld [vmem:[%s3 + $0x498] sm:$0xff]
    %v291 = vld [vmem:[%s3 + $0x4a0] sm:$0xff]
    %v292 = vld [vmem:[%s3 + $0x4a8] sm:$0xff]
    %v293 = vld [vmem:[%s3 + $0x4b0] sm:$0xf]
    %v294 = vld [vmem:[%s3 + $0x4b4] sm:$0xff]
    %v295 = vld [vmem:[%s3 + $0x4bc] sm:$0xff]
    %v296 = vld [vmem:[%s3 + $0x4c4] sm:$0xff]
    %v297 = vld [vmem:[%s3 + $0x4cc] sm:$0xf]
    %v298 = vld [vmem:[%s3 + $0x4d0] sm:$0xff]
    %v299 = vld [vmem:[%s3 + $0x4d8] sm:$0xff]
    %v300 = vld [vmem:[%s3 + $0x4e0] sm:$0xff]
    %v301 = vld [vmem:[%s3 + $0x4e8] sm:$0xf]
    %v302 = vld [vmem:[%s3 + $0x4ec] sm:$0xff]
    %v303 = vld [vmem:[%s3 + $0x4f4] sm:$0xff]
    %v304 = vld [vmem:[%s3 + $0x4fc] sm:$0xff]
    %v305 = vld [vmem:[%s3 + $0x504] sm:$0xf]
    %v306 = vld [vmem:[%s3 + $0x508] sm:$0xff]
    %v307 = vld [vmem:[%s3 + $0x510] sm:$0xff]
    %v308 = vld [vmem:[%s3 + $0x518] sm:$0xff]
    %v309 = vld [vmem:[%s3 + $0x520] sm:$0xf]
    %v310 = vld [vmem:[%s3 + $0x524] sm:$0xff]
    %v311 = vld [vmem:[%s3 + $0x52c] sm:$0xff]
    %v312 = vld [vmem:[%s3 + $0x534] sm:$0xff]
    %v313 = vld [vmem:[%s3 + $0x53c] sm:$0xf]
    %v314 = vld [vmem:[%s3 + $0x540] sm:$0xff]
    %v315 = vld [vmem:[%s3 + $0x548] sm:$0xff]
    %v316 = vld [vmem:[%s3 + $0x550] sm:$0xff]
    %v317 = vld [vmem:[%s3 + $0x558] sm:$0xf]
    %v318 = vld [vmem:[%s3 + $0x55c] sm:$0xff]
    %v319 = vld [vmem:[%s3 + $0x564] sm:$0xff]
    %v320 = vld [vmem:[%s3 + $0x56c] sm:$0xff]
    %v321 = vld [vmem:[%s3 + $0x574] sm:$0xf]
    %v322 = vld [vmem:[%s3 + $0x578] sm:$0xff]
    %v323 = vld [vmem:[%s3 + $0x580] sm:$0xff]
    %v324 = vld [vmem:[%s3 + $0x588] sm:$0xff]
    %v325 = vld [vmem:[%s3 + $0x590] sm:$0xf]
    %v326 = vld [vmem:[%s3 + $0x594] sm:$0xff]
    %v327 = vld [vmem:[%s3 + $0x59c] sm:$0xff]
    %v328 = vld [vmem:[%s3 + $0x5a4] sm:$0xff]
    %v329 = vld [vmem:[%s3 + $0x5ac] sm:$0xf]
    %v330 = vld [vmem:[%s3 + $0x5b0] sm:$0xff]
    %v331 = vld [vmem:[%s3 + $0x5b8] sm:$0xff]
    %v332 = vld [vmem:[%s3 + $0x5c0] sm:$0xff]
    %v333 = vld [vmem:[%s3 + $0x5c8] sm:$0xf]
    %v334 = vld [vmem:[%s3 + $0x5cc] sm:$0xff]
    %v335 = vld [vmem:[%s3 + $0x5d4] sm:$0xff]
    %v336 = vld [vmem:[%s3 + $0x5dc] sm:$0xff]
    %v337 = vld [vmem:[%s3 + $0x5e4] sm:$0xf]
    %v338 = vld [vmem:[%s3 + $0x5e8] sm:$0xff]
    %v339 = vld [vmem:[%s3 + $0x5f0] sm:$0xff]
    %v340 = vld [vmem:[%s3 + $0x5f8] sm:$0xff]
    %v341 = vld [vmem:[%s3 + $0x600] sm:$0xf]
    %v342 = vld [vmem:[%s3 + $0x604] sm:$0xff]
    %v343 = vld [vmem:[%s3 + $0x60c] sm:$0xff]
    %v344 = vld [vmem:[%s3 + $0x614] sm:$0xff]
    %v345 = vld [vmem:[%s3 + $0x61c] sm:$0xf]
    %v346 = vld [vmem:[%s3 + $0x620] sm:$0xff]
    %v347 = vld [vmem:[%s3 + $0x628] sm:$0xff]
    %v348 = vld [vmem:[%s3 + $0x630] sm:$0xff]
    %v349 = vld [vmem:[%s3 + $0x638] sm:$0xf]
    %v350 = vld [vmem:[%s3 + $0x63c] sm:$0xff]
    %v351 = vld [vmem:[%s3 + $0x644] sm:$0xff]
    %v352 = vld [vmem:[%s3 + $0x64c] sm:$0xff]
    %v353 = vld [vmem:[%s3 + $0x654] sm:$0xf]
    %v354 = vld [vmem:[%s3 + $0x658] sm:$0xff]
    %v355 = vld [vmem:[%s3 + $0x660] sm:$0xff]
    %v356 = vld [vmem:[%s3 + $0x668] sm:$0xff]
    %v357 = vld [vmem:[%s3 + $0x670] sm:$0xf]
    %v358 = vld [vmem:[%s3 + $0x674] sm:$0xff]
    %v359 = vld [vmem:[%s3 + $0x67c] sm:$0xff]
    %v360 = vld [vmem:[%s3 + $0x684] sm:$0xff]
    %v361 = vld [vmem:[%s3 + $0x68c] sm:$0xf]
    %v362 = vld [vmem:[%s3 + $0x690] sm:$0xff]
    %v363 = vld [vmem:[%s3 + $0x698] sm:$0xff]
    %v364 = vld [vmem:[%s3 + $0x6a0] sm:$0xff]
    %v365 = vld [vmem:[%s3 + $0x6a8] sm:$0xf]
    %v366 = vld [vmem:[%s3 + $0x6ac] sm:$0xff]
    %v367 = vld [vmem:[%s3 + $0x6b4] sm:$0xff]
    %v368 = vld [vmem:[%s3 + $0x6bc] sm:$0xff]
    %v369 = vld [vmem:[%s3 + $0x6c4] sm:$0xf]
    %v370 = vld [vmem:[%s3 + $0x6c8] sm:$0xff]
    %v371 = vld [vmem:[%s3 + $0x6d0] sm:$0xff]
    %v372 = vld [vmem:[%s3 + $0x6d8] sm:$0xff]
    %v373 = vld [vmem:[%s3 + $0x6e0] sm:$0xf]
    %v374 = vld [vmem:[%s3 + $0x6e4] sm:$0xff]
    %v375 = vld [vmem:[%s3 + $0x6ec] sm:$0xff]
    %v376 = vld [vmem:[%s3 + $0x6f4] sm:$0xff]
    %v377 = vld [vmem:[%s3 + $0x6fc] sm:$0xf]
    %v378 = vld [vmem:[%s4] sm:$0x7f]
    %v380 = vperm.slane %v378, 0
    %v381 = vperm.slane %v378, 1
    %v382 = vperm.slane %v378, 2
    %v383 = vperm.slane %v378, 3
    %v384 = vperm.slane %v378, 4
    %v385 = vperm.slane %v378, 5
    %v386 = vperm.slane %v378, 6
    %v650 = vunpack.c.l.b16 %v122
    %v651 = vunpack.c.h.b16 %v122
    %v652 = vunpack.c.l.b16 %v123
    %v653 = vunpack.c.h.b16 %v123
    %v654 = vunpack.c.l.b16 %v124
    %v655 = vunpack.c.h.b16 %v124
    %v656 = vunpack.c.l.b16 %v125
    %v657 = vunpack.c.l.b16 %v126
    %v658 = vunpack.c.h.b16 %v126
    %v659 = vunpack.c.l.b16 %v127
    %v660 = vunpack.c.h.b16 %v127
    %v661 = vunpack.c.l.b16 %v128
    %v662 = vunpack.c.h.b16 %v128
    %v663 = vunpack.c.l.b16 %v129
    %v664 = vunpack.c.l.b16 %v130
    %v665 = vunpack.c.h.b16 %v130
    %v666 = vunpack.c.l.b16 %v131
    %v667 = vunpack.c.h.b16 %v131
    %v668 = vunpack.c.l.b16 %v132
    %v669 = vunpack.c.h.b16 %v132
    %v670 = vunpack.c.l.b16 %v133
    %v671 = vunpack.c.l.b16 %v134
    %v672 = vunpack.c.h.b16 %v134
    %v673 = vunpack.c.l.b16 %v135
    %v674 = vunpack.c.h.b16 %v135
    %v675 = vunpack.c.l.b16 %v136
    %v676 = vunpack.c.h.b16 %v136
    %v677 = vunpack.c.l.b16 %v137
    %v678 = vunpack.c.l.b16 %v138
    %v679 = vunpack.c.h.b16 %v138
    %v680 = vunpack.c.l.b16 %v139
    %v681 = vunpack.c.h.b16 %v139
    %v682 = vunpack.c.l.b16 %v140
    %v683 = vunpack.c.h.b16 %v140
    %v684 = vunpack.c.l.b16 %v141
    %v685 = vunpack.c.l.b16 %v142
    %v686 = vunpack.c.h.b16 %v142
    %v687 = vunpack.c.l.b16 %v143
    %v688 = vunpack.c.h.b16 %v143
    %v689 = vunpack.c.l.b16 %v144
    %v690 = vunpack.c.h.b16 %v144
    %v691 = vunpack.c.l.b16 %v145
    %v692 = vunpack.c.l.b16 %v146
    %v693 = vunpack.c.h.b16 %v146
    %v694 = vunpack.c.l.b16 %v147
    %v695 = vunpack.c.h.b16 %v147
    %v696 = vunpack.c.l.b16 %v148
    %v697 = vunpack.c.h.b16 %v148
    %v698 = vunpack.c.l.b16 %v149
    %v699 = vunpack.c.l.b16 %v150
    %v700 = vunpack.c.h.b16 %v150
    %v701 = vunpack.c.l.b16 %v151
    %v702 = vunpack.c.h.b16 %v151
    %v703 = vunpack.c.l.b16 %v152
    %v704 = vunpack.c.h.b16 %v152
    %v705 = vunpack.c.l.b16 %v153
    %v706 = vunpack.c.l.b16 %v154
    %v707 = vunpack.c.h.b16 %v154
    %v708 = vunpack.c.l.b16 %v155
    %v709 = vunpack.c.h.b16 %v155
    %v710 = vunpack.c.l.b16 %v156
    %v711 = vunpack.c.h.b16 %v156
    %v712 = vunpack.c.l.b16 %v157
    %v713 = vunpack.c.l.b16 %v158
    %v714 = vunpack.c.h.b16 %v158
    %v715 = vunpack.c.l.b16 %v159
    %v716 = vunpack.c.h.b16 %v159
    %v717 = vunpack.c.l.b16 %v160
    %v718 = vunpack.c.h.b16 %v160
    %v719 = vunpack.c.l.b16 %v161
    %v720 = vunpack.c.l.b16 %v162
    %v721 = vunpack.c.h.b16 %v162
    %v722 = vunpack.c.l.b16 %v163
    %v723 = vunpack.c.h.b16 %v163
    %v724 = vunpack.c.l.b16 %v164
    %v725 = vunpack.c.h.b16 %v164
    %v726 = vunpack.c.l.b16 %v165
    %v727 = vunpack.c.l.b16 %v166
    %v728 = vunpack.c.h.b16 %v166
    %v729 = vunpack.c.l.b16 %v167
    %v730 = vunpack.c.h.b16 %v167
    %v731 = vunpack.c.l.b16 %v168
    %v732 = vunpack.c.h.b16 %v168
    %v733 = vunpack.c.l.b16 %v169
    %v734 = vunpack.c.l.b16 %v170
    %v735 = vunpack.c.h.b16 %v170
    %v736 = vunpack.c.l.b16 %v171
    %v737 = vunpack.c.h.b16 %v171
    %v738 = vunpack.c.l.b16 %v172
    %v739 = vunpack.c.h.b16 %v172
    %v740 = vunpack.c.l.b16 %v173
    %v741 = vunpack.c.l.b16 %v174
    %v742 = vunpack.c.h.b16 %v174
    %v743 = vunpack.c.l.b16 %v175
    %v744 = vunpack.c.h.b16 %v175
    %v745 = vunpack.c.l.b16 %v176
    %v746 = vunpack.c.h.b16 %v176
    %v747 = vunpack.c.l.b16 %v177
    %v748 = vunpack.c.l.b16 %v178
    %v749 = vunpack.c.h.b16 %v178
    %v750 = vunpack.c.l.b16 %v179
    %v751 = vunpack.c.h.b16 %v179
    %v752 = vunpack.c.l.b16 %v180
    %v753 = vunpack.c.h.b16 %v180
    %v754 = vunpack.c.l.b16 %v181
    %v755 = vunpack.c.l.b16 %v182
    %v756 = vunpack.c.h.b16 %v182
    %v757 = vunpack.c.l.b16 %v183
    %v758 = vunpack.c.h.b16 %v183
    %v759 = vunpack.c.l.b16 %v184
    %v760 = vunpack.c.h.b16 %v184
    %v761 = vunpack.c.l.b16 %v185
    %v762 = vunpack.c.l.b16 %v186
    %v763 = vunpack.c.h.b16 %v186
    %v764 = vunpack.c.l.b16 %v187
    %v765 = vunpack.c.h.b16 %v187
    %v766 = vunpack.c.l.b16 %v188
    %v767 = vunpack.c.h.b16 %v188
    %v768 = vunpack.c.l.b16 %v189
    %v769 = vunpack.c.l.b16 %v190
    %v770 = vunpack.c.h.b16 %v190
    %v771 = vunpack.c.l.b16 %v191
    %v772 = vunpack.c.h.b16 %v191
    %v773 = vunpack.c.l.b16 %v192
    %v774 = vunpack.c.h.b16 %v192
    %v775 = vunpack.c.l.b16 %v193
    %v776 = vunpack.c.l.b16 %v194
    %v777 = vunpack.c.h.b16 %v194
    %v778 = vunpack.c.l.b16 %v195
    %v779 = vunpack.c.h.b16 %v195
    %v780 = vunpack.c.l.b16 %v196
    %v781 = vunpack.c.h.b16 %v196
    %v782 = vunpack.c.l.b16 %v197
    %v783 = vunpack.c.l.b16 %v198
    %v784 = vunpack.c.h.b16 %v198
    %v785 = vunpack.c.l.b16 %v199
    %v786 = vunpack.c.h.b16 %v199
    %v787 = vunpack.c.l.b16 %v200
    %v788 = vunpack.c.h.b16 %v200
    %v789 = vunpack.c.l.b16 %v201
    %v790 = vunpack.c.l.b16 %v202
    %v791 = vunpack.c.h.b16 %v202
    %v792 = vunpack.c.l.b16 %v203
    %v793 = vunpack.c.h.b16 %v203
    %v794 = vunpack.c.l.b16 %v204
    %v795 = vunpack.c.h.b16 %v204
    %v796 = vunpack.c.l.b16 %v205
    %v797 = vunpack.c.l.b16 %v206
    %v798 = vunpack.c.h.b16 %v206
    %v799 = vunpack.c.l.b16 %v207
    %v800 = vunpack.c.h.b16 %v207
    %v801 = vunpack.c.l.b16 %v208
    %v802 = vunpack.c.h.b16 %v208
    %v803 = vunpack.c.l.b16 %v209
    %v804 = vunpack.c.l.b16 %v210
    %v805 = vunpack.c.h.b16 %v210
    %v806 = vunpack.c.l.b16 %v211
    %v807 = vunpack.c.h.b16 %v211
    %v808 = vunpack.c.l.b16 %v212
    %v809 = vunpack.c.h.b16 %v212
    %v810 = vunpack.c.l.b16 %v213
    %v811 = vunpack.c.l.b16 %v214
    %v812 = vunpack.c.h.b16 %v214
    %v813 = vunpack.c.l.b16 %v215
    %v814 = vunpack.c.h.b16 %v215
    %v815 = vunpack.c.l.b16 %v216
    %v816 = vunpack.c.h.b16 %v216
    %v817 = vunpack.c.l.b16 %v217
    %v818 = vunpack.c.l.b16 %v218
    %v819 = vunpack.c.h.b16 %v218
    %v820 = vunpack.c.l.b16 %v219
    %v821 = vunpack.c.h.b16 %v219
    %v822 = vunpack.c.l.b16 %v220
    %v823 = vunpack.c.h.b16 %v220
    %v824 = vunpack.c.l.b16 %v221
    %v825 = vunpack.c.l.b16 %v222
    %v826 = vunpack.c.h.b16 %v222
    %v827 = vunpack.c.l.b16 %v223
    %v828 = vunpack.c.h.b16 %v223
    %v829 = vunpack.c.l.b16 %v224
    %v830 = vunpack.c.h.b16 %v224
    %v831 = vunpack.c.l.b16 %v225
    %v832 = vunpack.c.l.b16 %v226
    %v833 = vunpack.c.h.b16 %v226
    %v834 = vunpack.c.l.b16 %v227
    %v835 = vunpack.c.h.b16 %v227
    %v836 = vunpack.c.l.b16 %v228
    %v837 = vunpack.c.h.b16 %v228
    %v838 = vunpack.c.l.b16 %v229
    %v839 = vunpack.c.l.b16 %v230
    %v840 = vunpack.c.h.b16 %v230
    %v841 = vunpack.c.l.b16 %v231
    %v842 = vunpack.c.h.b16 %v231
    %v843 = vunpack.c.l.b16 %v232
    %v844 = vunpack.c.h.b16 %v232
    %v845 = vunpack.c.l.b16 %v233
    %v846 = vunpack.c.l.b16 %v234
    %v847 = vunpack.c.h.b16 %v234
    %v848 = vunpack.c.l.b16 %v235
    %v849 = vunpack.c.h.b16 %v235
    %v850 = vunpack.c.l.b16 %v236
    %v851 = vunpack.c.h.b16 %v236
    %v852 = vunpack.c.l.b16 %v237
    %v853 = vunpack.c.l.b16 %v238
    %v854 = vunpack.c.h.b16 %v238
    %v855 = vunpack.c.l.b16 %v239
    %v856 = vunpack.c.h.b16 %v239
    %v857 = vunpack.c.l.b16 %v240
    %v858 = vunpack.c.h.b16 %v240
    %v859 = vunpack.c.l.b16 %v241
    %v860 = vunpack.c.l.b16 %v242
    %v861 = vunpack.c.h.b16 %v242
    %v862 = vunpack.c.l.b16 %v243
    %v863 = vunpack.c.h.b16 %v243
    %v864 = vunpack.c.l.b16 %v244
    %v865 = vunpack.c.h.b16 %v244
    %v866 = vunpack.c.l.b16 %v245
    %v867 = vunpack.c.l.b16 %v246
    %v868 = vunpack.c.h.b16 %v246
    %v869 = vunpack.c.l.b16 %v247
    %v870 = vunpack.c.h.b16 %v247
    %v871 = vunpack.c.l.b16 %v248
    %v872 = vunpack.c.h.b16 %v248
    %v873 = vunpack.c.l.b16 %v249
    %v874 = vunpack.c.l.b16 %v250
    %v875 = vunpack.c.h.b16 %v250
    %v876 = vunpack.c.l.b16 %v251
    %v877 = vunpack.c.h.b16 %v251
    %v878 = vunpack.c.l.b16 %v252
    %v879 = vunpack.c.h.b16 %v252
    %v880 = vunpack.c.l.b16 %v253
    %v881 = vunpack.c.l.b16 %v254
    %v882 = vunpack.c.h.b16 %v254
    %v883 = vunpack.c.l.b16 %v255
    %v884 = vunpack.c.h.b16 %v255
    %v885 = vunpack.c.l.b16 %v256
    %v886 = vunpack.c.h.b16 %v256
    %v887 = vunpack.c.l.b16 %v257
    %v888 = vunpack.c.l.b16 %v258
    %v889 = vunpack.c.h.b16 %v258
    %v890 = vunpack.c.l.b16 %v259
    %v891 = vunpack.c.h.b16 %v259
    %v892 = vunpack.c.l.b16 %v260
    %v893 = vunpack.c.h.b16 %v260
    %v894 = vunpack.c.l.b16 %v261
    %v895 = vunpack.c.l.b16 %v262
    %v896 = vunpack.c.h.b16 %v262
    %v897 = vunpack.c.l.b16 %v263
    %v898 = vunpack.c.h.b16 %v263
    %v899 = vunpack.c.l.b16 %v264
    %v900 = vunpack.c.h.b16 %v264
    %v901 = vunpack.c.l.b16 %v265
    %v902 = vunpack.c.l.b16 %v266
    %v903 = vunpack.c.h.b16 %v266
    %v904 = vunpack.c.l.b16 %v267
    %v905 = vunpack.c.h.b16 %v267
    %v906 = vunpack.c.l.b16 %v268
    %v907 = vunpack.c.h.b16 %v268
    %v908 = vunpack.c.l.b16 %v269
    %v909 = vunpack.c.l.b16 %v270
    %v910 = vunpack.c.h.b16 %v270
    %v911 = vunpack.c.l.b16 %v271
    %v912 = vunpack.c.h.b16 %v271
    %v913 = vunpack.c.l.b16 %v272
    %v914 = vunpack.c.h.b16 %v272
    %v915 = vunpack.c.l.b16 %v273
    %v916 = vunpack.c.l.b16 %v274
    %v917 = vunpack.c.h.b16 %v274
    %v918 = vunpack.c.l.b16 %v275
    %v919 = vunpack.c.h.b16 %v275
    %v920 = vunpack.c.l.b16 %v276
    %v921 = vunpack.c.h.b16 %v276
    %v922 = vunpack.c.l.b16 %v277
    %v923 = vunpack.c.l.b16 %v278
    %v924 = vunpack.c.h.b16 %v278
    %v925 = vunpack.c.l.b16 %v279
    %v926 = vunpack.c.h.b16 %v279
    %v927 = vunpack.c.l.b16 %v280
    %v928 = vunpack.c.h.b16 %v280
    %v929 = vunpack.c.l.b16 %v281
    %v930 = vunpack.c.l.b16 %v282
    %v931 = vunpack.c.h.b16 %v282
    %v932 = vunpack.c.l.b16 %v283
    %v933 = vunpack.c.h.b16 %v283
    %v934 = vunpack.c.l.b16 %v284
    %v935 = vunpack.c.h.b16 %v284
    %v936 = vunpack.c.l.b16 %v285
    %v937 = vunpack.c.l.b16 %v286
    %v938 = vunpack.c.h.b16 %v286
    %v939 = vunpack.c.l.b16 %v287
    %v940 = vunpack.c.h.b16 %v287
    %v941 = vunpack.c.l.b16 %v288
    %v942 = vunpack.c.h.b16 %v288
    %v943 = vunpack.c.l.b16 %v289
    %v944 = vunpack.c.l.b16 %v290
    %v945 = vunpack.c.h.b16 %v290
    %v946 = vunpack.c.l.b16 %v291
    %v947 = vunpack.c.h.b16 %v291
    %v948 = vunpack.c.l.b16 %v292
    %v949 = vunpack.c.h.b16 %v292
    %v950 = vunpack.c.l.b16 %v293
    %v951 = vunpack.c.l.b16 %v294
    %v952 = vunpack.c.h.b16 %v294
    %v953 = vunpack.c.l.b16 %v295
    %v954 = vunpack.c.h.b16 %v295
    %v955 = vunpack.c.l.b16 %v296
    %v956 = vunpack.c.h.b16 %v296
    %v957 = vunpack.c.l.b16 %v297
    %v958 = vunpack.c.l.b16 %v298
    %v959 = vunpack.c.h.b16 %v298
    %v960 = vunpack.c.l.b16 %v299
    %v961 = vunpack.c.h.b16 %v299
    %v962 = vunpack.c.l.b16 %v300
    %v963 = vunpack.c.h.b16 %v300
    %v964 = vunpack.c.l.b16 %v301
    %v965 = vunpack.c.l.b16 %v302
    %v966 = vunpack.c.h.b16 %v302
    %v967 = vunpack.c.l.b16 %v303
    %v968 = vunpack.c.h.b16 %v303
    %v969 = vunpack.c.l.b16 %v304
    %v970 = vunpack.c.h.b16 %v304
    %v971 = vunpack.c.l.b16 %v305
    %v972 = vunpack.c.l.b16 %v306
    %v973 = vunpack.c.h.b16 %v306
    %v974 = vunpack.c.l.b16 %v307
    %v975 = vunpack.c.h.b16 %v307
    %v976 = vunpack.c.l.b16 %v308
    %v977 = vunpack.c.h.b16 %v308
    %v978 = vunpack.c.l.b16 %v309
    %v979 = vunpack.c.l.b16 %v310
    %v980 = vunpack.c.h.b16 %v310
    %v981 = vunpack.c.l.b16 %v311
    %v982 = vunpack.c.h.b16 %v311
    %v983 = vunpack.c.l.b16 %v312
    %v984 = vunpack.c.h.b16 %v312
    %v985 = vunpack.c.l.b16 %v313
    %v986 = vunpack.c.l.b16 %v314
    %v987 = vunpack.c.h.b16 %v314
    %v988 = vunpack.c.l.b16 %v315
    %v989 = vunpack.c.h.b16 %v315
    %v990 = vunpack.c.l.b16 %v316
    %v991 = vunpack.c.h.b16 %v316
    %v992 = vunpack.c.l.b16 %v317
    %v993 = vunpack.c.l.b16 %v318
    %v994 = vunpack.c.h.b16 %v318
    %v995 = vunpack.c.l.b16 %v319
    %v996 = vunpack.c.h.b16 %v319
    %v997 = vunpack.c.l.b16 %v320
    %v998 = vunpack.c.h.b16 %v320
    %v999 = vunpack.c.l.b16 %v321
    %v1000 = vunpack.c.l.b16 %v322
    %v1001 = vunpack.c.h.b16 %v322
    %v1002 = vunpack.c.l.b16 %v323
    %v1003 = vunpack.c.h.b16 %v323
    %v1004 = vunpack.c.l.b16 %v324
    %v1005 = vunpack.c.h.b16 %v324
    %v1006 = vunpack.c.l.b16 %v325
    %v1007 = vunpack.c.l.b16 %v326
    %v1008 = vunpack.c.h.b16 %v326
    %v1009 = vunpack.c.l.b16 %v327
    %v1010 = vunpack.c.h.b16 %v327
    %v1011 = vunpack.c.l.b16 %v328
    %v1012 = vunpack.c.h.b16 %v328
    %v1013 = vunpack.c.l.b16 %v329
    %v1014 = vunpack.c.l.b16 %v330
    %v1015 = vunpack.c.h.b16 %v330
    %v1016 = vunpack.c.l.b16 %v331
    %v1017 = vunpack.c.h.b16 %v331
    %v1018 = vunpack.c.l.b16 %v332
    %v1019 = vunpack.c.h.b16 %v332
    %v1020 = vunpack.c.l.b16 %v333
    %v1021 = vunpack.c.l.b16 %v334
    %v1022 = vunpack.c.h.b16 %v334
    %v1023 = vunpack.c.l.b16 %v335
    %v1024 = vunpack.c.h.b16 %v335
    %v1025 = vunpack.c.l.b16 %v336
    %v1026 = vunpack.c.h.b16 %v336
    %v1027 = vunpack.c.l.b16 %v337
    %v1028 = vunpack.c.l.b16 %v338
    %v1029 = vunpack.c.h.b16 %v338
    %v1030 = vunpack.c.l.b16 %v339
    %v1031 = vunpack.c.h.b16 %v339
    %v1032 = vunpack.c.l.b16 %v340
    %v1033 = vunpack.c.h.b16 %v340
    %v1034 = vunpack.c.l.b16 %v341
    %v1035 = vunpack.c.l.b16 %v342
    %v1036 = vunpack.c.h.b16 %v342
    %v1037 = vunpack.c.l.b16 %v343
    %v1038 = vunpack.c.h.b16 %v343
    %v1039 = vunpack.c.l.b16 %v344
    %v1040 = vunpack.c.h.b16 %v344
    %v1041 = vunpack.c.l.b16 %v345
    %v1042 = vunpack.c.l.b16 %v346
    %v1043 = vunpack.c.h.b16 %v346
    %v1044 = vunpack.c.l.b16 %v347
    %v1045 = vunpack.c.h.b16 %v347
    %v1046 = vunpack.c.l.b16 %v348
    %v1047 = vunpack.c.h.b16 %v348
    %v1048 = vunpack.c.l.b16 %v349
    %v1049 = vunpack.c.l.b16 %v350
    %v1050 = vunpack.c.h.b16 %v350
    %v1051 = vunpack.c.l.b16 %v351
    %v1052 = vunpack.c.h.b16 %v351
    %v1053 = vunpack.c.l.b16 %v352
    %v1054 = vunpack.c.h.b16 %v352
    %v1055 = vunpack.c.l.b16 %v353
    %v1056 = vunpack.c.l.b16 %v354
    %v1057 = vunpack.c.h.b16 %v354
    %v1058 = vunpack.c.l.b16 %v355
    %v1059 = vunpack.c.h.b16 %v355
    %v1060 = vunpack.c.l.b16 %v356
    %v1061 = vunpack.c.h.b16 %v356
    %v1062 = vunpack.c.l.b16 %v357
    %v1063 = vunpack.c.l.b16 %v358
    %v1064 = vunpack.c.h.b16 %v358
    %v1065 = vunpack.c.l.b16 %v359
    %v1066 = vunpack.c.h.b16 %v359
    %v1067 = vunpack.c.l.b16 %v360
    %v1068 = vunpack.c.h.b16 %v360
    %v1069 = vunpack.c.l.b16 %v361
    %v1070 = vunpack.c.l.b16 %v362
    %v1071 = vunpack.c.h.b16 %v362
    %v1072 = vunpack.c.l.b16 %v363
    %v1073 = vunpack.c.h.b16 %v363
    %v1074 = vunpack.c.l.b16 %v364
    %v1075 = vunpack.c.h.b16 %v364
    %v1076 = vunpack.c.l.b16 %v365
    %v1077 = vunpack.c.l.b16 %v366
    %v1078 = vunpack.c.h.b16 %v366
    %v1079 = vunpack.c.l.b16 %v367
    %v1080 = vunpack.c.h.b16 %v367
    %v1081 = vunpack.c.l.b16 %v368
    %v1082 = vunpack.c.h.b16 %v368
    %v1083 = vunpack.c.l.b16 %v369
    %v1084 = vunpack.c.l.b16 %v370
    %v1085 = vunpack.c.h.b16 %v370
    %v1086 = vunpack.c.l.b16 %v371
    %v1087 = vunpack.c.h.b16 %v371
    %v1088 = vunpack.c.l.b16 %v372
    %v1089 = vunpack.c.h.b16 %v372
    %v1090 = vunpack.c.l.b16 %v373
    %v1091 = vunpack.c.l.b16 %v374
    %v1092 = vunpack.c.h.b16 %v374
    %v1093 = vunpack.c.l.b16 %v375
    %v1094 = vunpack.c.h.b16 %v375
    %v1095 = vunpack.c.l.b16 %v376
    %v1096 = vunpack.c.h.b16 %v376
    %v1097 = vunpack.c.l.b16 %v377
    %v1098 = vpack.c.b16 %v657, %v650
    %v1099 = vpack.c.b16 %v658, %v651
    %v1100 = vpack.c.b16 %v659, %v652
    %v1101 = vpack.c.b16 %v660, %v653
    %v1102 = vpack.c.b16 %v661, %v654
    %v1103 = vpack.c.b16 %v662, %v655
    %v1104 = vpack.c.b16 %v663, %v656
    %v1105 = vpack.c.b16 %v671, %v664
    %v1106 = vpack.c.b16 %v672, %v665
    %v1107 = vpack.c.b16 %v673, %v666
    %v1108 = vpack.c.b16 %v674, %v667
    %v1109 = vpack.c.b16 %v675, %v668
    %v1110 = vpack.c.b16 %v676, %v669
    %v1111 = vpack.c.b16 %v677, %v670
    %v1112 = vpack.c.b16 %v685, %v678
    %v1113 = vpack.c.b16 %v686, %v679
    %v1114 = vpack.c.b16 %v687, %v680
    %v1115 = vpack.c.b16 %v688, %v681
    %v1116 = vpack.c.b16 %v689, %v682
    %v1117 = vpack.c.b16 %v690, %v683
    %v1118 = vpack.c.b16 %v691, %v684
    %v1119 = vpack.c.b16 %v699, %v692
    %v1120 = vpack.c.b16 %v700, %v693
    %v1121 = vpack.c.b16 %v701, %v694
    %v1122 = vpack.c.b16 %v702, %v695
    %v1123 = vpack.c.b16 %v703, %v696
    %v1124 = vpack.c.b16 %v704, %v697
    %v1125 = vpack.c.b16 %v705, %v698
    %v1126 = vpack.c.b16 %v713, %v706
    %v1127 = vpack.c.b16 %v714, %v707
    %v1128 = vpack.c.b16 %v715, %v708
    %v1129 = vpack.c.b16 %v716, %v709
    %v1130 = vpack.c.b16 %v717, %v710
    %v1131 = vpack.c.b16 %v718, %v711
    %v1132 = vpack.c.b16 %v719, %v712
    %v1133 = vpack.c.b16 %v727, %v720
    %v1134 = vpack.c.b16 %v728, %v721
    %v1135 = vpack.c.b16 %v729, %v722
    %v1136 = vpack.c.b16 %v730, %v723
    %v1137 = vpack.c.b16 %v731, %v724
    %v1138 = vpack.c.b16 %v732, %v725
    %v1139 = vpack.c.b16 %v733, %v726
    %v1140 = vpack.c.b16 %v741, %v734
    %v1141 = vpack.c.b16 %v742, %v735
    %v1142 = vpack.c.b16 %v743, %v736
    %v1143 = vpack.c.b16 %v744, %v737
    %v1144 = vpack.c.b16 %v745, %v738
    %v1145 = vpack.c.b16 %v746, %v739
    %v1146 = vpack.c.b16 %v747, %v740
    %v1147 = vpack.c.b16 %v755, %v748
    %v1148 = vpack.c.b16 %v756, %v749
    %v1149 = vpack.c.b16 %v757, %v750
    %v1150 = vpack.c.b16 %v758, %v751
    %v1151 = vpack.c.b16 %v759, %v752
    %v1152 = vpack.c.b16 %v760, %v753
    %v1153 = vpack.c.b16 %v761, %v754
    %v1154 = vpack.c.b16 %v769, %v762
    %v1155 = vpack.c.b16 %v770, %v763
    %v1156 = vpack.c.b16 %v771, %v764
    %v1157 = vpack.c.b16 %v772, %v765
    %v1158 = vpack.c.b16 %v773, %v766
    %v1159 = vpack.c.b16 %v774, %v767
    %v1160 = vpack.c.b16 %v775, %v768
    %v1161 = vpack.c.b16 %v783, %v776
    %v1162 = vpack.c.b16 %v784, %v777
    %v1163 = vpack.c.b16 %v785, %v778
    %v1164 = vpack.c.b16 %v786, %v779
    %v1165 = vpack.c.b16 %v787, %v780
    %v1166 = vpack.c.b16 %v788, %v781
    %v1167 = vpack.c.b16 %v789, %v782
    %v1168 = vpack.c.b16 %v797, %v790
    %v1169 = vpack.c.b16 %v798, %v791
    %v1170 = vpack.c.b16 %v799, %v792
    %v1171 = vpack.c.b16 %v800, %v793
    %v1172 = vpack.c.b16 %v801, %v794
    %v1173 = vpack.c.b16 %v802, %v795
    %v1174 = vpack.c.b16 %v803, %v796
    %v1175 = vpack.c.b16 %v811, %v804
    %v1176 = vpack.c.b16 %v812, %v805
    %v1177 = vpack.c.b16 %v813, %v806
    %v1178 = vpack.c.b16 %v814, %v807
    %v1179 = vpack.c.b16 %v815, %v808
    %v1180 = vpack.c.b16 %v816, %v809
    %v1181 = vpack.c.b16 %v817, %v810
    %v1182 = vpack.c.b16 %v825, %v818
    %v1183 = vpack.c.b16 %v826, %v819
    %v1184 = vpack.c.b16 %v827, %v820
    %v1185 = vpack.c.b16 %v828, %v821
    %v1186 = vpack.c.b16 %v829, %v822
    %v1187 = vpack.c.b16 %v830, %v823
    %v1188 = vpack.c.b16 %v831, %v824
    %v1189 = vpack.c.b16 %v839, %v832
    %v1190 = vpack.c.b16 %v840, %v833
    %v1191 = vpack.c.b16 %v841, %v834
    %v1192 = vpack.c.b16 %v842, %v835
    %v1193 = vpack.c.b16 %v843, %v836
    %v1194 = vpack.c.b16 %v844, %v837
    %v1195 = vpack.c.b16 %v845, %v838
    %v1196 = vpack.c.b16 %v853, %v846
    %v1197 = vpack.c.b16 %v854, %v847
    %v1198 = vpack.c.b16 %v855, %v848
    %v1199 = vpack.c.b16 %v856, %v849
    %v1200 = vpack.c.b16 %v857, %v850
    %v1201 = vpack.c.b16 %v858, %v851
    %v1202 = vpack.c.b16 %v859, %v852
    %v1203 = vpack.c.b16 %v867, %v860
    %v1204 = vpack.c.b16 %v868, %v861
    %v1205 = vpack.c.b16 %v869, %v862
    %v1206 = vpack.c.b16 %v870, %v863
    %v1207 = vpack.c.b16 %v871, %v864
    %v1208 = vpack.c.b16 %v872, %v865
    %v1209 = vpack.c.b16 %v873, %v866
    %v1210 = vpack.c.b16 %v881, %v874
    %v1211 = vpack.c.b16 %v882, %v875
    %v1212 = vpack.c.b16 %v883, %v876
    %v1213 = vpack.c.b16 %v884, %v877
    %v1214 = vpack.c.b16 %v885, %v878
    %v1215 = vpack.c.b16 %v886, %v879
    %v1216 = vpack.c.b16 %v887, %v880
    %v1217 = vpack.c.b16 %v895, %v888
    %v1218 = vpack.c.b16 %v896, %v889
    %v1219 = vpack.c.b16 %v897, %v890
    %v1220 = vpack.c.b16 %v898, %v891
    %v1221 = vpack.c.b16 %v899, %v892
    %v1222 = vpack.c.b16 %v900, %v893
    %v1223 = vpack.c.b16 %v901, %v894
    %v1224 = vpack.c.b16 %v909, %v902
    %v1225 = vpack.c.b16 %v910, %v903
    %v1226 = vpack.c.b16 %v911, %v904
    %v1227 = vpack.c.b16 %v912, %v905
    %v1228 = vpack.c.b16 %v913, %v906
    %v1229 = vpack.c.b16 %v914, %v907
    %v1230 = vpack.c.b16 %v915, %v908
    %v1231 = vpack.c.b16 %v923, %v916
    %v1232 = vpack.c.b16 %v924, %v917
    %v1233 = vpack.c.b16 %v925, %v918
    %v1234 = vpack.c.b16 %v926, %v919
    %v1235 = vpack.c.b16 %v927, %v920
    %v1236 = vpack.c.b16 %v928, %v921
    %v1237 = vpack.c.b16 %v929, %v922
    %v1238 = vpack.c.b16 %v937, %v930
    %v1239 = vpack.c.b16 %v938, %v931
    %v1240 = vpack.c.b16 %v939, %v932
    %v1241 = vpack.c.b16 %v940, %v933
    %v1242 = vpack.c.b16 %v941, %v934
    %v1243 = vpack.c.b16 %v942, %v935
    %v1244 = vpack.c.b16 %v943, %v936
    %v1245 = vpack.c.b16 %v951, %v944
    %v1246 = vpack.c.b16 %v952, %v945
    %v1247 = vpack.c.b16 %v953, %v946
    %v1248 = vpack.c.b16 %v954, %v947
    %v1249 = vpack.c.b16 %v955, %v948
    %v1250 = vpack.c.b16 %v956, %v949
    %v1251 = vpack.c.b16 %v957, %v950
    %v1252 = vpack.c.b16 %v965, %v958
    %v1253 = vpack.c.b16 %v966, %v959
    %v1254 = vpack.c.b16 %v967, %v960
    %v1255 = vpack.c.b16 %v968, %v961
    %v1256 = vpack.c.b16 %v969, %v962
    %v1257 = vpack.c.b16 %v970, %v963
    %v1258 = vpack.c.b16 %v971, %v964
    %v1259 = vpack.c.b16 %v979, %v972
    %v1260 = vpack.c.b16 %v980, %v973
    %v1261 = vpack.c.b16 %v981, %v974
    %v1262 = vpack.c.b16 %v982, %v975
    %v1263 = vpack.c.b16 %v983, %v976
    %v1264 = vpack.c.b16 %v984, %v977
    %v1265 = vpack.c.b16 %v985, %v978
    %v1266 = vpack.c.b16 %v993, %v986
    %v1267 = vpack.c.b16 %v994, %v987
    %v1268 = vpack.c.b16 %v995, %v988
    %v1269 = vpack.c.b16 %v996, %v989
    %v1270 = vpack.c.b16 %v997, %v990
    %v1271 = vpack.c.b16 %v998, %v991
    %v1272 = vpack.c.b16 %v999, %v992
    %v1273 = vpack.c.b16 %v1007, %v1000
    %v1274 = vpack.c.b16 %v1008, %v1001
    %v1275 = vpack.c.b16 %v1009, %v1002
    %v1276 = vpack.c.b16 %v1010, %v1003
    %v1277 = vpack.c.b16 %v1011, %v1004
    %v1278 = vpack.c.b16 %v1012, %v1005
    %v1279 = vpack.c.b16 %v1013, %v1006
    %v1280 = vpack.c.b16 %v1021, %v1014
    %v1281 = vpack.c.b16 %v1022, %v1015
    %v1282 = vpack.c.b16 %v1023, %v1016
    %v1283 = vpack.c.b16 %v1024, %v1017
    %v1284 = vpack.c.b16 %v1025, %v1018
    %v1285 = vpack.c.b16 %v1026, %v1019
    %v1286 = vpack.c.b16 %v1027, %v1020
    %v1287 = vpack.c.b16 %v1035, %v1028
    %v1288 = vpack.c.b16 %v1036, %v1029
    %v1289 = vpack.c.b16 %v1037, %v1030
    %v1290 = vpack.c.b16 %v1038, %v1031
    %v1291 = vpack.c.b16 %v1039, %v1032
    %v1292 = vpack.c.b16 %v1040, %v1033
    %v1293 = vpack.c.b16 %v1041, %v1034
    %v1294 = vpack.c.b16 %v1049, %v1042
    %v1295 = vpack.c.b16 %v1050, %v1043
    %v1296 = vpack.c.b16 %v1051, %v1044
    %v1297 = vpack.c.b16 %v1052, %v1045
    %v1298 = vpack.c.b16 %v1053, %v1046
    %v1299 = vpack.c.b16 %v1054, %v1047
    %v1300 = vpack.c.b16 %v1055, %v1048
    %v1301 = vpack.c.b16 %v1063, %v1056
    %v1302 = vpack.c.b16 %v1064, %v1057
    %v1303 = vpack.c.b16 %v1065, %v1058
    %v1304 = vpack.c.b16 %v1066, %v1059
    %v1305 = vpack.c.b16 %v1067, %v1060
    %v1306 = vpack.c.b16 %v1068, %v1061
    %v1307 = vpack.c.b16 %v1069, %v1062
    %v1308 = vpack.c.b16 %v1077, %v1070
    %v1309 = vpack.c.b16 %v1078, %v1071
    %v1310 = vpack.c.b16 %v1079, %v1072
    %v1311 = vpack.c.b16 %v1080, %v1073
    %v1312 = vpack.c.b16 %v1081, %v1074
    %v1313 = vpack.c.b16 %v1082, %v1075
    %v1314 = vpack.c.b16 %v1083, %v1076
    %v1315 = vpack.c.b16 %v1091, %v1084
    %v1316 = vpack.c.b16 %v1092, %v1085
    %v1317 = vpack.c.b16 %v1093, %v1086
    %v1318 = vpack.c.b16 %v1094, %v1087
    %v1319 = vpack.c.b16 %v1095, %v1088
    %v1320 = vpack.c.b16 %v1096, %v1089
    %v1321 = vpack.c.b16 %v1097, %v1090
    %1546 = vmatpush.bf16.msra.mxu0 %v1147
    %1547 = vmatpush.bf16.msra.mxu0 %v1140
    %1548 = vmatpush.bf16.msra.mxu0 %v1133
    %1549 = vmatpush.bf16.msra.mxu0 %v1126
    %1550 = vmatpush.bf16.msra.mxu0 %v1119
    %1551 = vmatpush.bf16.msra.mxu0 %v1112
    %1552 = vmatpush.bf16.msra.mxu0 %v1105
    %1553 = vmatpush.bf16.msra.mxu0 %v1098
    %1554 = vmatmul.bf16.gmra.mxu0 %v118
    %v1555 = vpop.f32.mrf.mxu0
    %v1556 = vadd.f32 %v380, %v1555
    %v1557 = vpop.f32.mrf.mxu0
    %1558 = vdwg.mxu0
    %1559 = vmatpush.bf16.msra.mxu0 %v1203
    %1560 = vmatpush.bf16.msra.mxu0 %v1196
    %1561 = vmatpush.bf16.msra.mxu0 %v1189
    %1562 = vmatpush.bf16.msra.mxu0 %v1182
    %1563 = vmatpush.bf16.msra.mxu0 %v1175
    %1564 = vmatpush.bf16.msra.mxu0 %v1168
    %1565 = vmatpush.bf16.msra.mxu0 %v1161
    %1566 = vmatpush.bf16.msra.mxu0 %v1154
    %1567 = vmatmul.bf16.gmra.mxu0 %v119
    %v1568 = vpop.f32.mrf.mxu0
    %v1569 = vadd.f32 %v1556, %v1568
    %v1570 = vpop.f32.mrf.mxu0
    %1571 = vdwg.mxu0
    %1572 = vmatpush.bf16.msra.mxu0 %v1259
    %1573 = vmatpush.bf16.msra.mxu0 %v1252
    %1574 = vmatpush.bf16.msra.mxu0 %v1245
    %1575 = vmatpush.bf16.msra.mxu0 %v1238
    %1576 = vmatpush.bf16.msra.mxu0 %v1231
    %1577 = vmatpush.bf16.msra.mxu0 %v1224
    %1578 = vmatpush.bf16.msra.mxu0 %v1217
    %1579 = vmatpush.bf16.msra.mxu0 %v1210
    %1580 = vmatmul.bf16.gmra.mxu0 %v120
    %v1581 = vpop.f32.mrf.mxu0
    %v1582 = vadd.f32 %v1569, %v1581
    %v1583 = vpop.f32.mrf.mxu0
    %1584 = vdwg.mxu0
    %1585 = vmatpush.bf16.msra.mxu0 %v1315
    %1586 = vmatpush.bf16.msra.mxu0 %v1308
    %1587 = vmatpush.bf16.msra.mxu0 %v1301
    %1588 = vmatpush.bf16.msra.mxu0 %v1294
    %1589 = vmatpush.bf16.msra.mxu0 %v1287
    %1590 = vmatpush.bf16.msra.mxu0 %v1280
    %1591 = vmatpush.bf16.msra.mxu0 %v1273
    %1592 = vmatpush.bf16.msra.mxu0 %v1266
    %1593 = vmatmul.bf16.gmra.mxu0 %v121
    %v1594 = vpop.f32.mrf.mxu0
    %v1595 = vadd.f32 %v1582, %v1594
    %v1596 = vpop.f32.mrf.mxu0
    %1597 = vdwg.mxu0
    %1598 = vmatpush.bf16.msra.mxu0 %v1148
    %1599 = vmatpush.bf16.msra.mxu0 %v1141
    %1600 = vmatpush.bf16.msra.mxu0 %v1134
    %1601 = vmatpush.bf16.msra.mxu0 %v1127
    %1602 = vmatpush.bf16.msra.mxu0 %v1120
    %1603 = vmatpush.bf16.msra.mxu0 %v1113
    %1604 = vmatpush.bf16.msra.mxu0 %v1106
    %1605 = vmatpush.bf16.msra.mxu0 %v1099
    %1606 = vmatmul.bf16.gmra.mxu0 %v118
    %v1607 = vpop.f32.mrf.mxu0
    %v1608 = vadd.f32 %v381, %v1607
    %v1609 = vpop.f32.mrf.mxu0
    %1610 = vdwg.mxu0
    %1611 = vmatpush.bf16.msra.mxu0 %v1204
    %1612 = vmatpush.bf16.msra.mxu0 %v1197
    %1613 = vmatpush.bf16.msra.mxu0 %v1190
    %1614 = vmatpush.bf16.msra.mxu0 %v1183
    %1615 = vmatpush.bf16.msra.mxu0 %v1176
    %1616 = vmatpush.bf16.msra.mxu0 %v1169
    %1617 = vmatpush.bf16.msra.mxu0 %v1162
    %1618 = vmatpush.bf16.msra.mxu0 %v1155
    %1619 = vmatmul.bf16.gmra.mxu0 %v119
    %v1620 = vpop.f32.mrf.mxu0
    %v1621 = vadd.f32 %v1608, %v1620
    %v1622 = vpop.f32.mrf.mxu0
    %1623 = vdwg.mxu0
    %1624 = vmatpush.bf16.msra.mxu0 %v1260
    %1625 = vmatpush.bf16.msra.mxu0 %v1253
    %1626 = vmatpush.bf16.msra.mxu0 %v1246
    %1627 = vmatpush.bf16.msra.mxu0 %v1239
    %1628 = vmatpush.bf16.msra.mxu0 %v1232
    %1629 = vmatpush.bf16.msra.mxu0 %v1225
    %1630 = vmatpush.bf16.msra.mxu0 %v1218
    %1631 = vmatpush.bf16.msra.mxu0 %v1211
    %1632 = vmatmul.bf16.gmra.mxu0 %v120
    %v1633 = vpop.f32.mrf.mxu0
    %v1634 = vadd.f32 %v1621, %v1633
    %v1635 = vpop.f32.mrf.mxu0
    %1636 = vdwg.mxu0
    %1637 = vmatpush.bf16.msra.mxu0 %v1316
    %1638 = vmatpush.bf16.msra.mxu0 %v1309
    %1639 = vmatpush.bf16.msra.mxu0 %v1302
    %1640 = vmatpush.bf16.msra.mxu0 %v1295
    %1641 = vmatpush.bf16.msra.mxu0 %v1288
    %1642 = vmatpush.bf16.msra.mxu0 %v1281
    %1643 = vmatpush.bf16.msra.mxu0 %v1274
    %1644 = vmatpush.bf16.msra.mxu0 %v1267
    %1645 = vmatmul.bf16.gmra.mxu0 %v121
    %v1646 = vpop.f32.mrf.mxu0
    %v1647 = vadd.f32 %v1634, %v1646
    %v1648 = vpop.f32.mrf.mxu0
    %1649 = vdwg.mxu0
    %1650 = vmatpush.bf16.msra.mxu0 %v1149
    %1651 = vmatpush.bf16.msra.mxu0 %v1142
    %1652 = vmatpush.bf16.msra.mxu0 %v1135
    %1653 = vmatpush.bf16.msra.mxu0 %v1128
    %1654 = vmatpush.bf16.msra.mxu0 %v1121
    %1655 = vmatpush.bf16.msra.mxu0 %v1114
    %1656 = vmatpush.bf16.msra.mxu0 %v1107
    %1657 = vmatpush.bf16.msra.mxu0 %v1100
    %1658 = vmatmul.bf16.gmra.mxu0 %v118
    %v1659 = vpop.f32.mrf.mxu0
    %v1660 = vadd.f32 %v382, %v1659
    %v1661 = vpop.f32.mrf.mxu0
    %1662 = vdwg.mxu0
    %1663 = vmatpush.bf16.msra.mxu0 %v1205
    %1664 = vmatpush.bf16.msra.mxu0 %v1198
    %1665 = vmatpush.bf16.msra.mxu0 %v1191
    %1666 = vmatpush.bf16.msra.mxu0 %v1184
    %1667 = vmatpush.bf16.msra.mxu0 %v1177
    %1668 = vmatpush.bf16.msra.mxu0 %v1170
    %1669 = vmatpush.bf16.msra.mxu0 %v1163
    %1670 = vmatpush.bf16.msra.mxu0 %v1156
    %1671 = vmatmul.bf16.gmra.mxu0 %v119
    %v1672 = vpop.f32.mrf.mxu0
    %v1673 = vadd.f32 %v1660, %v1672
    %v1674 = vpop.f32.mrf.mxu0
    %1675 = vdwg.mxu0
    %1676 = vmatpush.bf16.msra.mxu0 %v1261
    %1677 = vmatpush.bf16.msra.mxu0 %v1254
    %1678 = vmatpush.bf16.msra.mxu0 %v1247
    %1679 = vmatpush.bf16.msra.mxu0 %v1240
    %1680 = vmatpush.bf16.msra.mxu0 %v1233
    %1681 = vmatpush.bf16.msra.mxu0 %v1226
    %1682 = vmatpush.bf16.msra.mxu0 %v1219
    %1683 = vmatpush.bf16.msra.mxu0 %v1212
    %1684 = vmatmul.bf16.gmra.mxu0 %v120
    %v1685 = vpop.f32.mrf.mxu0
    %v1686 = vadd.f32 %v1673, %v1685
    %v1687 = vpop.f32.mrf.mxu0
    %1688 = vdwg.mxu0
    %1689 = vmatpush.bf16.msra.mxu0 %v1317
    %1690 = vmatpush.bf16.msra.mxu0 %v1310
    %1691 = vmatpush.bf16.msra.mxu0 %v1303
    %1692 = vmatpush.bf16.msra.mxu0 %v1296
    %1693 = vmatpush.bf16.msra.mxu0 %v1289
    %1694 = vmatpush.bf16.msra.mxu0 %v1282
    %1695 = vmatpush.bf16.msra.mxu0 %v1275
    %1696 = vmatpush.bf16.msra.mxu0 %v1268
    %1697 = vmatmul.bf16.gmra.mxu0 %v121
    %v1698 = vpop.f32.mrf.mxu0
    %v1699 = vadd.f32 %v1686, %v1698
    %v1700 = vpop.f32.mrf.mxu0
    %1701 = vdwg.mxu0
    %1702 = vmatpush.bf16.msra.mxu0 %v1150
    %1703 = vmatpush.bf16.msra.mxu0 %v1143
    %1704 = vmatpush.bf16.msra.mxu0 %v1136
    %1705 = vmatpush.bf16.msra.mxu0 %v1129
    %1706 = vmatpush.bf16.msra.mxu0 %v1122
    %1707 = vmatpush.bf16.msra.mxu0 %v1115
    %1708 = vmatpush.bf16.msra.mxu0 %v1108
    %1709 = vmatpush.bf16.msra.mxu0 %v1101
    %1710 = vmatmul.bf16.gmra.mxu0 %v118
    %v1711 = vpop.f32.mrf.mxu0
    %v1712 = vadd.f32 %v383, %v1711
    %v1713 = vpop.f32.mrf.mxu0
    %1714 = vdwg.mxu0
    %1715 = vmatpush.bf16.msra.mxu0 %v1206
    %1716 = vmatpush.bf16.msra.mxu0 %v1199
    %1717 = vmatpush.bf16.msra.mxu0 %v1192
    %1718 = vmatpush.bf16.msra.mxu0 %v1185
    %1719 = vmatpush.bf16.msra.mxu0 %v1178
    %1720 = vmatpush.bf16.msra.mxu0 %v1171
    %1721 = vmatpush.bf16.msra.mxu0 %v1164
    %1722 = vmatpush.bf16.msra.mxu0 %v1157
    %1723 = vmatmul.bf16.gmra.mxu0 %v119
    %v1724 = vpop.f32.mrf.mxu0
    %v1725 = vadd.f32 %v1712, %v1724
    %v1726 = vpop.f32.mrf.mxu0
    %1727 = vdwg.mxu0
    %1728 = vmatpush.bf16.msra.mxu0 %v1262
    %1729 = vmatpush.bf16.msra.mxu0 %v1255
    %1730 = vmatpush.bf16.msra.mxu0 %v1248
    %1731 = vmatpush.bf16.msra.mxu0 %v1241
    %1732 = vmatpush.bf16.msra.mxu0 %v1234
    %1733 = vmatpush.bf16.msra.mxu0 %v1227
    %1734 = vmatpush.bf16.msra.mxu0 %v1220
    %1735 = vmatpush.bf16.msra.mxu0 %v1213
    %1736 = vmatmul.bf16.gmra.mxu0 %v120
    %v1737 = vpop.f32.mrf.mxu0
    %v1738 = vadd.f32 %v1725, %v1737
    %v1739 = vpop.f32.mrf.mxu0
    %1740 = vdwg.mxu0
    %1741 = vmatpush.bf16.msra.mxu0 %v1318
    %1742 = vmatpush.bf16.msra.mxu0 %v1311
    %1743 = vmatpush.bf16.msra.mxu0 %v1304
    %1744 = vmatpush.bf16.msra.mxu0 %v1297
    %1745 = vmatpush.bf16.msra.mxu0 %v1290
    %1746 = vmatpush.bf16.msra.mxu0 %v1283
    %1747 = vmatpush.bf16.msra.mxu0 %v1276
    %1748 = vmatpush.bf16.msra.mxu0 %v1269
    %1749 = vmatmul.bf16.gmra.mxu0 %v121
    %v1750 = vpop.f32.mrf.mxu0
    %v1751 = vadd.f32 %v1738, %v1750
    %v1752 = vpop.f32.mrf.mxu0
    %1753 = vdwg.mxu0
    %1754 = vmatpush.bf16.msra.mxu0 %v1151
    %1755 = vmatpush.bf16.msra.mxu0 %v1144
    %1756 = vmatpush.bf16.msra.mxu0 %v1137
    %1757 = vmatpush.bf16.msra.mxu0 %v1130
    %1758 = vmatpush.bf16.msra.mxu0 %v1123
    %1759 = vmatpush.bf16.msra.mxu0 %v1116
    %1760 = vmatpush.bf16.msra.mxu0 %v1109
    %1761 = vmatpush.bf16.msra.mxu0 %v1102
    %1762 = vmatmul.bf16.gmra.mxu0 %v118
    %v1763 = vpop.f32.mrf.mxu0
    %v1764 = vadd.f32 %v384, %v1763
    %v1765 = vpop.f32.mrf.mxu0
    %1766 = vdwg.mxu0
    %1767 = vmatpush.bf16.msra.mxu0 %v1207
    %1768 = vmatpush.bf16.msra.mxu0 %v1200
    %1769 = vmatpush.bf16.msra.mxu0 %v1193
    %1770 = vmatpush.bf16.msra.mxu0 %v1186
    %1771 = vmatpush.bf16.msra.mxu0 %v1179
    %1772 = vmatpush.bf16.msra.mxu0 %v1172
    %1773 = vmatpush.bf16.msra.mxu0 %v1165
    %1774 = vmatpush.bf16.msra.mxu0 %v1158
    %1775 = vmatmul.bf16.gmra.mxu0 %v119
    %v1776 = vpop.f32.mrf.mxu0
    %v1777 = vadd.f32 %v1764, %v1776
    %v1778 = vpop.f32.mrf.mxu0
    %1779 = vdwg.mxu0
    %1780 = vmatpush.bf16.msra.mxu0 %v1263
    %1781 = vmatpush.bf16.msra.mxu0 %v1256
    %1782 = vmatpush.bf16.msra.mxu0 %v1249
    %1783 = vmatpush.bf16.msra.mxu0 %v1242
    %1784 = vmatpush.bf16.msra.mxu0 %v1235
    %1785 = vmatpush.bf16.msra.mxu0 %v1228
    %1786 = vmatpush.bf16.msra.mxu0 %v1221
    %1787 = vmatpush.bf16.msra.mxu0 %v1214
    %1788 = vmatmul.bf16.gmra.mxu0 %v120
    %v1789 = vpop.f32.mrf.mxu0
    %v1790 = vadd.f32 %v1777, %v1789
    %v1791 = vpop.f32.mrf.mxu0
    %1792 = vdwg.mxu0
    %1793 = vmatpush.bf16.msra.mxu0 %v1319
    %1794 = vmatpush.bf16.msra.mxu0 %v1312
    %1795 = vmatpush.bf16.msra.mxu0 %v1305
    %1796 = vmatpush.bf16.msra.mxu0 %v1298
    %1797 = vmatpush.bf16.msra.mxu0 %v1291
    %1798 = vmatpush.bf16.msra.mxu0 %v1284
    %1799 = vmatpush.bf16.msra.mxu0 %v1277
    %1800 = vmatpush.bf16.msra.mxu0 %v1270
    %1801 = vmatmul.bf16.gmra.mxu0 %v121
    %v1802 = vpop.f32.mrf.mxu0
    %v1803 = vadd.f32 %v1790, %v1802
    %v1804 = vpop.f32.mrf.mxu0
    %1805 = vdwg.mxu0
    %1806 = vmatpush.bf16.msra.mxu0 %v1152
    %1807 = vmatpush.bf16.msra.mxu0 %v1145
    %1808 = vmatpush.bf16.msra.mxu0 %v1138
    %1809 = vmatpush.bf16.msra.mxu0 %v1131
    %1810 = vmatpush.bf16.msra.mxu0 %v1124
    %1811 = vmatpush.bf16.msra.mxu0 %v1117
    %1812 = vmatpush.bf16.msra.mxu0 %v1110
    %1813 = vmatpush.bf16.msra.mxu0 %v1103
    %1814 = vmatmul.bf16.gmra.mxu0 %v118
    %v1815 = vpop.f32.mrf.mxu0
    %v1816 = vadd.f32 %v385, %v1815
    %v1817 = vpop.f32.mrf.mxu0
    %1818 = vdwg.mxu0
    %1819 = vmatpush.bf16.msra.mxu0 %v1208
    %1820 = vmatpush.bf16.msra.mxu0 %v1201
    %1821 = vmatpush.bf16.msra.mxu0 %v1194
    %1822 = vmatpush.bf16.msra.mxu0 %v1187
    %1823 = vmatpush.bf16.msra.mxu0 %v1180
    %1824 = vmatpush.bf16.msra.mxu0 %v1173
    %1825 = vmatpush.bf16.msra.mxu0 %v1166
    %1826 = vmatpush.bf16.msra.mxu0 %v1159
    %1827 = vmatmul.bf16.gmra.mxu0 %v119
    %v1828 = vpop.f32.mrf.mxu0
    %v1829 = vadd.f32 %v1816, %v1828
    %v1830 = vpop.f32.mrf.mxu0
    %1831 = vdwg.mxu0
    %1832 = vmatpush.bf16.msra.mxu0 %v1264
    %1833 = vmatpush.bf16.msra.mxu0 %v1257
    %1834 = vmatpush.bf16.msra.mxu0 %v1250
    %1835 = vmatpush.bf16.msra.mxu0 %v1243
    %1836 = vmatpush.bf16.msra.mxu0 %v1236
    %1837 = vmatpush.bf16.msra.mxu0 %v1229
    %1838 = vmatpush.bf16.msra.mxu0 %v1222
    %1839 = vmatpush.bf16.msra.mxu0 %v1215
    %1840 = vmatmul.bf16.gmra.mxu0 %v120
    %v1841 = vpop.f32.mrf.mxu0
    %v1842 = vadd.f32 %v1829, %v1841
    %v1843 = vpop.f32.mrf.mxu0
    %1844 = vdwg.mxu0
    %1845 = vmatpush.bf16.msra.mxu0 %v1320
    %1846 = vmatpush.bf16.msra.mxu0 %v1313
    %1847 = vmatpush.bf16.msra.mxu0 %v1306
    %1848 = vmatpush.bf16.msra.mxu0 %v1299
    %1849 = vmatpush.bf16.msra.mxu0 %v1292
    %1850 = vmatpush.bf16.msra.mxu0 %v1285
    %1851 = vmatpush.bf16.msra.mxu0 %v1278
    %1852 = vmatpush.bf16.msra.mxu0 %v1271
    %1853 = vmatmul.bf16.gmra.mxu0 %v121
    %v1854 = vpop.f32.mrf.mxu0
    %v1855 = vadd.f32 %v1842, %v1854
    %v1856 = vpop.f32.mrf.mxu0
    %1857 = vdwg.mxu0
    %1858 = vmatpush.bf16.msra.mxu0 %v1153
    %1859 = vmatpush.bf16.msra.mxu0 %v1146
    %1860 = vmatpush.bf16.msra.mxu0 %v1139
    %1861 = vmatpush.bf16.msra.mxu0 %v1132
    %1862 = vmatpush.bf16.msra.mxu0 %v1125
    %1863 = vmatpush.bf16.msra.mxu0 %v1118
    %1864 = vmatpush.bf16.msra.mxu0 %v1111
    %1865 = vmatpush.bf16.msra.mxu0 %v1104
    %1866 = vmatmul.bf16.gmra.mxu0 %v118
    %v1867 = vpop.f32.mrf.mxu0
    %v1868 = vadd.f32 %v386, %v1867
    %v1869 = vpop.f32.mrf.mxu0
    %1870 = vdwg.mxu0
    %1871 = vmatpush.bf16.msra.mxu0 %v1209
    %1872 = vmatpush.bf16.msra.mxu0 %v1202
    %1873 = vmatpush.bf16.msra.mxu0 %v1195
    %1874 = vmatpush.bf16.msra.mxu0 %v1188
    %1875 = vmatpush.bf16.msra.mxu0 %v1181
    %1876 = vmatpush.bf16.msra.mxu0 %v1174
    %1877 = vmatpush.bf16.msra.mxu0 %v1167
    %1878 = vmatpush.bf16.msra.mxu0 %v1160
    %1879 = vmatmul.bf16.gmra.mxu0 %v119
    %v1880 = vpop.f32.mrf.mxu0
    %v1881 = vadd.f32 %v1868, %v1880
    %v1882 = vpop.f32.mrf.mxu0
    %1883 = vdwg.mxu0
    %1884 = vmatpush.bf16.msra.mxu0 %v1265
    %1885 = vmatpush.bf16.msra.mxu0 %v1258
    %1886 = vmatpush.bf16.msra.mxu0 %v1251
    %1887 = vmatpush.bf16.msra.mxu0 %v1244
    %1888 = vmatpush.bf16.msra.mxu0 %v1237
    %1889 = vmatpush.bf16.msra.mxu0 %v1230
    %1890 = vmatpush.bf16.msra.mxu0 %v1223
    %1891 = vmatpush.bf16.msra.mxu0 %v1216
    %1892 = vmatmul.bf16.gmra.mxu0 %v120
    %v1893 = vpop.f32.mrf.mxu0
    %v1894 = vadd.f32 %v1881, %v1893
    %v1895 = vpop.f32.mrf.mxu0
    %1896 = vdwg.mxu0
    %1897 = vmatpush.bf16.msra.mxu0 %v1321
    %1898 = vmatpush.bf16.msra.mxu0 %v1314
    %1899 = vmatpush.bf16.msra.mxu0 %v1307
    %1900 = vmatpush.bf16.msra.mxu0 %v1300
    %1901 = vmatpush.bf16.msra.mxu0 %v1293
    %1902 = vmatpush.bf16.msra.mxu0 %v1286
    %1903 = vmatpush.bf16.msra.mxu0 %v1279
    %1904 = vmatpush.bf16.msra.mxu0 %v1272
    %1905 = vmatmul.bf16.gmra.mxu0 %v121
    %v1906 = vpop.f32.mrf.mxu0
    %v1907 = vadd.f32 %v1894, %v1906
    %v1908 = vpop.f32.mrf.mxu0
    %1909 = vdwg.mxu0
    %v1910 = vsub.f32 0.0, %v1595
    %v1911 = vsub.f32 0.0, %v1647
    %v1912 = vsub.f32 0.0, %v1699
    %v1913 = vsub.f32 0.0, %v1751
    %v1914 = vsub.f32 0.0, %v1803
    %v1915 = vsub.f32 0.0, %v1855
    %v1916 = vsub.f32 0.0, %v1907
    %v1917 = vmul.f32 %v1910, 1.442695
    %v1918 = vpow.pop %v1917
    %v1919 = vmul.f32 %v1911, 1.442695
    %v1920 = vpow.pop %v1919
    %v1921 = vmul.f32 %v1912, 1.442695
    %v1922 = vpow.pop %v1921
    %v1923 = vmul.f32 %v1913, 1.442695
    %v1924 = vpow.pop %v1923
    %v1925 = vmul.f32 %v1914, 1.442695
    %v1926 = vpow.pop %v1925
    %v1927 = vmul.f32 %v1915, 1.442695
    %v1928 = vpow.pop %v1927
    %v1929 = vmul.f32 %v1916, 1.442695
    %v1930 = vpow.pop %v1929
    %v1931 = vadd.f32 %v1918, 1.0
    %v1932 = vadd.f32 %v1920, 1.0
    %v1933 = vadd.f32 %v1922, 1.0
    %v1934 = vadd.f32 %v1924, 1.0
    %v1935 = vadd.f32 %v1926, 1.0
    %v1936 = vadd.f32 %v1928, 1.0
    %v1937 = vadd.f32 %v1930, 1.0
    %v1938 = vrcp.pop %v1931
    %v1939 = vrcp.pop %v1932
    %v1940 = vrcp.pop %v1933
    %v1941 = vrcp.pop %v1934
    %v1942 = vrcp.pop %v1935
    %v1943 = vrcp.pop %v1936
    %v1944 = vrcp.pop %v1937
    %1945 = vst [vmem:[#allocation2] sm:$0xff] %v1938
    %1946 = vst [vmem:[#allocation2 + $0x8] sm:$0xff] %v1939
    %1947 = vst [vmem:[#allocation2 + $0x10] sm:$0xff] %v1940
    %1948 = vst [vmem:[#allocation2 + $0x18] sm:$0xff] %v1941
    %1949 = vst [vmem:[#allocation2 + $0x20] sm:$0xff] %v1942
    %1950 = vst [vmem:[#allocation2 + $0x28] sm:$0xff] %v1943
    %1951 = vst.msk [vmem:[#allocation2 + $0x30] sm:$0xff] %vm58, %v1944
    // Predicated region
    $region22: #{tpu_custom_call.1} parent=1 // pred_check
      _
    $region23: #{tpu_custom_call.1} parent=1 // pred_check_branch
      %1953 = sbr.rel (0) target = $region25
    $region24: #{tpu_custom_call.1} parent=1 // pred_region
      %1955 = vsyncadd [#allocation3], 0
      %s1957 = sshll.u32 [#allocation2], 4
      %s1958 = int_to_ptr.vmem [resolvable:$true] %s1957
      %s1959 = sshll.u32 %s5, 4
      %s1960 = int_to_ptr.hbm [resolvable:$true] %s1959
      %1962 = dma.vmem_to_hbm [thread:$0]  %s1958, 896, %s1960, [#allocation3]
    $region25: #{tpu_custom_call.1} parent=1 // pred_fallthru
      _
    // Predicated region
    $region26: #{tpu_custom_call.1} parent=1 // pred_check
      _
    $region27: #{tpu_custom_call.1} parent=1 // pred_check_branch
      %1964 = sbr.rel (0) target = $region29
    $region28: #{tpu_custom_call.1} parent=1 // pred_region
      %1966 = dma.done [#allocation3], 896
    $region29: #{tpu_custom_call.1} parent=1 // pred_fallthru
      _
    %1967 = vsyncpa [#allocation3], 1

</llo_original>
